<compile_context>
chip_gen: v7x
topology: tpu7x:2x2x1
jax: 0.10.0
libtpu: 0.0.40
codegen_flags: <defaults>
</compile_context>

<pallas_src>
import jax
import jax.numpy as jnp
from jax.experimental import pallas as pl
from jax.experimental.pallas import tpu as pltpu

_LN_EPS = 1e-5
_MAX_TILE_B = 2048   # rows per grid step; f32 activations -> a few MiB of VMEM
_MIN_SPLIT_B = 16    # split into >=2 grid steps only if each tile keeps >=8 rows


def _round_up(x, m):
    return (x + m - 1) // m * m


def _layernorm(x, gamma, beta):
    """Exact LayerNorm over the (unpadded) last axis."""
    mean = jnp.mean(x, axis=-1, keepdims=True)
    diff = x - mean
    var = jnp.mean(diff * diff, axis=-1, keepdims=True)
    return diff * jax.lax.rsqrt(var + _LN_EPS) * gamma + beta


def _actor_kernel(state_ref, w1_ref, bgb1_ref, w2_ref, bgb2_ref,
                  w3_ref, b3_ref, out_ref):
    hp = jax.lax.Precision.HIGHEST
    x = state_ref[...]                                    # [tile_b, state_dims]

    # fc1 -> LayerNorm(gamma, beta) -> ReLU
    h = jnp.dot(x, w1_ref[...], preferred_element_type=jnp.float32,
                precision=hp) + bgb1_ref[0:1, :]
    h = jnp.maximum(_layernorm(h, bgb1_ref[1:2, :], bgb1_ref[2:3, :]), 0.0)

    # fc2 -> LayerNorm(gamma, beta) -> ReLU
    h = jnp.dot(h, w2_ref[...], preferred_element_type=jnp.float32,
                precision=hp) + bgb2_ref[0:1, :]
    h = jnp.maximum(_layernorm(h, bgb2_ref[1:2, :], bgb2_ref[2:3, :]), 0.0)

    # mu head -> tanh  (true action width; masked vst cost << padded-byte cost)
    mu = jnp.dot(h, w3_ref[...], preferred_element_type=jnp.float32,
                 precision=hp) + b3_ref[...]
    out_ref[...] = jnp.tanh(mu).astype(out_ref.dtype)


@jax.jit
def actor_forward(state, w1, bgb1, w2, bgb2, w3, b3):
    batch, state_dims = state.shape
    action_dims = w3.shape[1]

    # Grid sizing: enough steps for the per-step row cap; keep >=2 steps when
    # the batch allows so ("parallel",) can shard across v7x's 2 TensorCores.
    # Tiles evenly divide the batch (mod rounding to 8 sublanes) so at most
    # 7 padded rows exist in the final tile.
    num_steps = max(int(pl.cdiv(batch, _MAX_TILE_B)), 1)
    if batch >= _MIN_SPLIT_B:
        num_steps = max(num_steps, 2)
    tile_b = _round_up(int(pl.cdiv(batch, num_steps)), 8)
    b_pad = _round_up(batch, tile_b)
    grid = (b_pad // tile_b,)

    state = state.astype(jnp.float32)
    if b_pad != batch:
        state = jnp.pad(state, ((0, b_pad - batch), (0, 0)))

    # Whole-array blocks with constant index_maps: parameters are DMA'd once
    # and stay VMEM-resident across all grid steps.
    def const(a):
        return pl.BlockSpec(a.shape, lambda i: (0, 0))

    out = pl.pallas_call(
        _actor_kernel,
        out_shape=jax.ShapeDtypeStruct((b_pad, action_dims), jnp.float32),
        grid=grid,
        in_specs=[
            pl.BlockSpec((tile_b, state_dims), lambda i: (i, 0)),
            const(w1), const(bgb1), const(w2), const(bgb2),
            const(w3), const(b3),
        ],
        out_specs=pl.BlockSpec((tile_b, action_dims), lambda i: (i, 0)),
        compiler_params=pltpu.CompilerParams(
            dimension_semantics=("parallel",)),
    )(state, w1, bgb1, w2, bgb2, w3, b3)

    if b_pad != batch:
        out = out[:batch]
    return out


def init_params(key, state_dims, action_dims, h1, h2):
    """Mirrors ActorNetwork.__init__: fc.weight.size()[0] == out_features, so
    f1 = 1/sqrt(h1), f2 = 1/sqrt(h2), f3 = 3e-4 (bias bound f3*0.1).  Weights
    are [in, out]; biases / LayerNorm gamma / beta are (1, h) rows; LayerNorm
    defaults gamma=1, beta=0 (elementwise_affine=True)."""
    k = jax.random.split(key, 6)
    f1 = 1.0 / float(h1) ** 0.5
    f2 = 1.0 / float(h2) ** 0.5
    f3 = 0.0003
    u = lambda kk, shape, lim: jax.random.uniform(
        kk, shape, jnp.float32, minval=-lim, maxval=lim)

    w1 = u(k[0], (state_dims, h1), f1)
    b1 = u(k[1], (1, h1), f1)
    g1 = jnp.ones((1, h1), jnp.float32)
    be1 = jnp.zeros((1, h1), jnp.float32)

    w2 = u(k[2], (h1, h2), f2)
    b2 = u(k[3], (1, h2), f2)
    g2 = jnp.ones((1, h2), jnp.float32)
    be2 = jnp.zeros((1, h2), jnp.float32)

    w3 = u(k[4], (h2, action_dims), f3)
    b3 = u(k[5], (1, action_dims), f3 * 0.1)
    return w1, b1, g1, be1, w2, b2, g2, be2, w3, b3


def pack_params(w1, b1, g1, be1, w2, b2, g2, be2, w3, b3):
    """One-time packing (outside the jitted forward): stack per-layer
    (bias, gamma, beta) into a single (3, h) array.  No padding needed."""
    f32 = jnp.float32
    bgb1 = jnp.concatenate([b1, g1, be1], axis=0).astype(f32)   # (3, h1)
    bgb2 = jnp.concatenate([b2, g2, be2], axis=0).astype(f32)   # (3, h2)
    return (w1.astype(f32), bgb1, w2.astype(f32), bgb2,
            w3.astype(f32), b3.astype(f32))


def _reference(state, w1, b1, g1, be1, w2, b2, g2, be2, w3, b3):
    hp = jax.lax.Precision.HIGHEST

    def ln(x, g, b):
        mean = jnp.mean(x, axis=-1, keepdims=True)
        var = jnp.mean(jnp.square(x - mean), axis=-1, keepdims=True)
        return (x - mean) * jax.lax.rsqrt(var + _LN_EPS) * g + b

    h = jnp.maximum(ln(jnp.dot(state, w1, precision=hp) + b1, g1, be1), 0.0)
    h = jnp.maximum(ln(jnp.dot(h, w2, precision=hp) + b2, g2, be2), 0.0)
    return jnp.tanh(jnp.dot(h, w3, precision=hp) + b3)


if __name__ == "__main__":
    # Small shapes consistent with the module: state_dims=32, h1=64, h2=32, actions=8.
    batch, state_dims, action_dims, h1, h2 = 8, 32, 8, 64, 32

    key = jax.random.PRNGKey(0)
    k_state, k_params, k_big, k_rag = jax.random.split(key, 4)
    raw = init_params(k_params, state_dims, action_dims, h1, h2)
    packed = pack_params(*raw)        # one-time packing, not part of forward

    state = jax.random.normal(k_state, (batch, state_dims), jnp.float32)
    mu = actor_forward(state, *packed)
    jax.block_until_ready(mu)
    assert mu.shape == (batch, action_dims)
    assert jnp.allclose(mu, _reference(state, *raw), atol=1e-5, rtol=1e-5), \
        "mismatch vs. JAX reference"

    # Larger batch: exercises the 2-step "parallel" grid (v7x megacore) and
    # weight residency across grid iterations; no padded rows (1280 = 2*640).
    big = jax.random.normal(k_big, (1280, state_dims), jnp.float32)
    mu_big = actor_forward(big, *packed)
    jax.block_until_ready(mu_big)
    assert mu_big.shape == (1280, action_dims)
    assert jnp.allclose(mu_big, _reference(big, *raw), atol=1e-5, rtol=1e-5), \
        "mismatch (big batch)"

    # Ragged batch: exercises the only remaining pad (batch rows) + final slice.
    rag = jax.random.normal(k_rag, (100, state_dims), jnp.float32)
    mu_rag = actor_forward(rag, *packed)
    jax.block_until_ready(mu_rag)
    assert mu_rag.shape == (100, action_dims)
    assert jnp.allclose(mu_rag, _reference(rag, *raw), atol=1e-5, rtol=1e-5), \
        "mismatch (ragged batch)"

    print("KERNEL_OK")
</pallas_src>

<mosaic_0001>
module attributes {stable_mosaic.version = 11 : i64} {
  func.func @_actor_kernel(%arg0: i32, %arg1: memref<8x32xf32, #tpu.memory_space<vmem>>, %arg2: memref<32x64xf32, #tpu.memory_space<vmem>>, %arg3: memref<3x64xf32, #tpu.memory_space<vmem>>, %arg4: memref<64x32xf32, #tpu.memory_space<vmem>>, %arg5: memref<3x32xf32, #tpu.memory_space<vmem>>, %arg6: memref<32x8xf32, #tpu.memory_space<vmem>>, %arg7: memref<1x8xf32, #tpu.memory_space<vmem>>, %arg8: memref<8x8xf32, #tpu.memory_space<vmem>>) attributes {dimension_semantics = [#tpu.dimension_semantics<parallel>], iteration_bounds = array<i64: 1>, scalar_prefetch = 0 : i64, scratch_operands = 0 : i64, tpu.core_type = #tpu.core_type<tc>, window_params = [{transform_indices = @transform_0, window_bounds = array<i64: 8, 32>}, {pipeline_mode = #tpu.pipeline_mode<synchronous>, transform_indices = @transform_1, window_bounds = array<i64: 32, 64>}, {pipeline_mode = #tpu.pipeline_mode<synchronous>, transform_indices = @transform_2, window_bounds = array<i64: 3, 64>}, {pipeline_mode = #tpu.pipeline_mode<synchronous>, transform_indices = @transform_3, window_bounds = array<i64: 64, 32>}, {pipeline_mode = #tpu.pipeline_mode<synchronous>, transform_indices = @transform_4, window_bounds = array<i64: 3, 32>}, {pipeline_mode = #tpu.pipeline_mode<synchronous>, transform_indices = @transform_5, window_bounds = array<i64: 32, 8>}, {pipeline_mode = #tpu.pipeline_mode<synchronous>, transform_indices = @transform_6, window_bounds = array<i64: 1, 8>}, {transform_indices = @transform_7, window_bounds = array<i64: 8, 8>}]} {
    %c0 = arith.constant 0 : index
    %c0_0 = arith.constant 0 : index
    %0 = vector.load %arg1[%c0, %c0_0] : memref<8x32xf32, #tpu.memory_space<vmem>>, vector<8x32xf32>
    %c0_1 = arith.constant 0 : index
    %c0_2 = arith.constant 0 : index
    %1 = vector.load %arg2[%c0_1, %c0_2] : memref<32x64xf32, #tpu.memory_space<vmem>>, vector<32x64xf32>
    %cst = arith.constant dense<0.000000e+00> : vector<8x64xf32>
    %2 = tpu.matmul %0, %1, %cst {dimension_numbers = #tpu.dot_dimension_numbers<[1], [0], [0], [1], [0, 0, 1, 1], [], []>, precision = #tpu.contract_precision<fp32>} : vector<8x32xf32>, vector<32x64xf32>, vector<8x64xf32> -> vector<8x64xf32>
    %c0_3 = arith.constant 0 : index
    %c0_4 = arith.constant 0 : index
    %3 = vector.load %arg3[%c0_3, %c0_4] : memref<3x64xf32, #tpu.memory_space<vmem>>, vector<1x64xf32>
    %4 = vector.broadcast %3 : vector<1x64xf32> to vector<8x64xf32>
    %5 = arith.addf %2, %4 : vector<8x64xf32>
    %c1 = arith.constant 1 : index
    %c0_5 = arith.constant 0 : index
    %6 = vector.load %arg3[%c1, %c0_5] : memref<3x64xf32, #tpu.memory_space<vmem>>, vector<1x64xf32>
    %c2 = arith.constant 2 : index
    %c0_6 = arith.constant 0 : index
    %7 = vector.load %arg3[%c2, %c0_6] : memref<3x64xf32, #tpu.memory_space<vmem>>, vector<1x64xf32>
    %cst_7 = arith.constant dense<0.000000e+00> : vector<8xf32>
    %8 = vector.multi_reduction <add>, %5, %cst_7 [1] : vector<8x64xf32> to vector<8xf32>
    %9 = vector.shape_cast %8 : vector<8xf32> to vector<8x1xf32>
    %cst_8 = arith.constant 6.400000e+01 : f32
    %10 = vector.broadcast %cst_8 : f32 to vector<8x1xf32>
    %11 = arith.divf %9, %10 : vector<8x1xf32>
    %12 = vector.broadcast %11 : vector<8x1xf32> to vector<8x64xf32>
    %13 = arith.subf %5, %12 : vector<8x64xf32>
    %14 = arith.mulf %13, %13 : vector<8x64xf32>
    %cst_9 = arith.constant dense<0.000000e+00> : vector<8xf32>
    %15 = vector.multi_reduction <add>, %14, %cst_9 [1] : vector<8x64xf32> to vector<8xf32>
    %16 = vector.shape_cast %15 : vector<8xf32> to vector<8x1xf32>
    %cst_10 = arith.constant 6.400000e+01 : f32
    %17 = vector.broadcast %cst_10 : f32 to vector<8x1xf32>
    %18 = arith.divf %16, %17 : vector<8x1xf32>
    %cst_11 = arith.constant 9.99999974E-6 : f32
    %19 = vector.broadcast %cst_11 : f32 to vector<8x1xf32>
    %20 = arith.addf %18, %19 : vector<8x1xf32>
    %21 = math.rsqrt %20 : vector<8x1xf32>
    %22 = vector.broadcast %21 : vector<8x1xf32> to vector<8x64xf32>
    %23 = arith.mulf %13, %22 : vector<8x64xf32>
    %24 = vector.broadcast %6 : vector<1x64xf32> to vector<8x64xf32>
    %25 = arith.mulf %23, %24 : vector<8x64xf32>
    %26 = vector.broadcast %7 : vector<1x64xf32> to vector<8x64xf32>
    %27 = arith.addf %25, %26 : vector<8x64xf32>
    %cst_12 = arith.constant 0.000000e+00 : f32
    %28 = vector.broadcast %cst_12 : f32 to vector<8x64xf32>
    %29 = arith.maximumf %27, %28 : vector<8x64xf32>
    %c0_13 = arith.constant 0 : index
    %c0_14 = arith.constant 0 : index
    %30 = vector.load %arg4[%c0_13, %c0_14] : memref<64x32xf32, #tpu.memory_space<vmem>>, vector<64x32xf32>
    %cst_15 = arith.constant dense<0.000000e+00> : vector<8x32xf32>
    %31 = tpu.matmul %29, %30, %cst_15 {dimension_numbers = #tpu.dot_dimension_numbers<[1], [0], [0], [1], [0, 0, 1, 1], [], []>, precision = #tpu.contract_precision<fp32>} : vector<8x64xf32>, vector<64x32xf32>, vector<8x32xf32> -> vector<8x32xf32>
    %c0_16 = arith.constant 0 : index
    %c0_17 = arith.constant 0 : index
    %32 = vector.load %arg5[%c0_16, %c0_17] : memref<3x32xf32, #tpu.memory_space<vmem>>, vector<1x32xf32>
    %33 = vector.broadcast %32 : vector<1x32xf32> to vector<8x32xf32>
    %34 = arith.addf %31, %33 : vector<8x32xf32>
    %c1_18 = arith.constant 1 : index
    %c0_19 = arith.constant 0 : index
    %35 = vector.load %arg5[%c1_18, %c0_19] : memref<3x32xf32, #tpu.memory_space<vmem>>, vector<1x32xf32>
    %c2_20 = arith.constant 2 : index
    %c0_21 = arith.constant 0 : index
    %36 = vector.load %arg5[%c2_20, %c0_21] : memref<3x32xf32, #tpu.memory_space<vmem>>, vector<1x32xf32>
    %cst_22 = arith.constant dense<0.000000e+00> : vector<8xf32>
    %37 = vector.multi_reduction <add>, %34, %cst_22 [1] : vector<8x32xf32> to vector<8xf32>
    %38 = vector.shape_cast %37 : vector<8xf32> to vector<8x1xf32>
    %cst_23 = arith.constant 3.200000e+01 : f32
    %39 = vector.broadcast %cst_23 : f32 to vector<8x1xf32>
    %40 = arith.divf %38, %39 : vector<8x1xf32>
    %41 = vector.broadcast %40 : vector<8x1xf32> to vector<8x32xf32>
    %42 = arith.subf %34, %41 : vector<8x32xf32>
    %43 = arith.mulf %42, %42 : vector<8x32xf32>
    %cst_24 = arith.constant dense<0.000000e+00> : vector<8xf32>
    %44 = vector.multi_reduction <add>, %43, %cst_24 [1] : vector<8x32xf32> to vector<8xf32>
    %45 = vector.shape_cast %44 : vector<8xf32> to vector<8x1xf32>
    %cst_25 = arith.constant 3.200000e+01 : f32
    %46 = vector.broadcast %cst_25 : f32 to vector<8x1xf32>
    %47 = arith.divf %45, %46 : vector<8x1xf32>
    %cst_26 = arith.constant 9.99999974E-6 : f32
    %48 = vector.broadcast %cst_26 : f32 to vector<8x1xf32>
    %49 = arith.addf %47, %48 : vector<8x1xf32>
    %50 = math.rsqrt %49 : vector<8x1xf32>
    %51 = vector.broadcast %50 : vector<8x1xf32> to vector<8x32xf32>
    %52 = arith.mulf %42, %51 : vector<8x32xf32>
    %53 = vector.broadcast %35 : vector<1x32xf32> to vector<8x32xf32>
    %54 = arith.mulf %52, %53 : vector<8x32xf32>
    %55 = vector.broadcast %36 : vector<1x32xf32> to vector<8x32xf32>
    %56 = arith.addf %54, %55 : vector<8x32xf32>
    %cst_27 = arith.constant 0.000000e+00 : f32
    %57 = vector.broadcast %cst_27 : f32 to vector<8x32xf32>
    %58 = arith.maximumf %56, %57 : vector<8x32xf32>
    %c0_28 = arith.constant 0 : index
    %c0_29 = arith.constant 0 : index
    %59 = vector.load %arg6[%c0_28, %c0_29] : memref<32x8xf32, #tpu.memory_space<vmem>>, vector<32x8xf32>
    %cst_30 = arith.constant dense<0.000000e+00> : vector<8x8xf32>
    %60 = tpu.matmul %58, %59, %cst_30 {dimension_numbers = #tpu.dot_dimension_numbers<[1], [0], [0], [1], [0, 0, 1, 1], [], []>, precision = #tpu.contract_precision<fp32>} : vector<8x32xf32>, vector<32x8xf32>, vector<8x8xf32> -> vector<8x8xf32>
    %c0_31 = arith.constant 0 : index
    %c0_32 = arith.constant 0 : index
    %61 = vector.load %arg7[%c0_31, %c0_32] : memref<1x8xf32, #tpu.memory_space<vmem>>, vector<1x8xf32>
    %62 = vector.broadcast %61 : vector<1x8xf32> to vector<8x8xf32>
    %63 = arith.addf %60, %62 : vector<8x8xf32>
    %64 = math.tanh %63 : vector<8x8xf32>
    %c0_33 = arith.constant 0 : index
    %c0_34 = arith.constant 0 : index
    %65 = vector.load %arg8[%c0_33, %c0_34] : memref<8x8xf32, #tpu.memory_space<vmem>>, vector<8x8xf32>
    tpu.vector_store %arg8[%c0_33, %c0_34], %64 {strides = array<i32>} : memref<8x8xf32, #tpu.memory_space<vmem>>, vector<8x8xf32>,
    return
  }
  func.func @transform_0(%arg0: i32) -> (i32, i32) {
    %c0_i32 = arith.constant 0 : i32
    %c0_i32_0 = arith.constant 0 : i32
    return %arg0, %c0_i32 : i32, i32
  }
  func.func @transform_1(%arg0: i32) -> (i32, i32) {
    %c0_i32 = arith.constant 0 : i32
    %c0_i32_0 = arith.constant 0 : i32
    %c0_i32_1 = arith.constant 0 : i32
    return %c0_i32, %c0_i32_0 : i32, i32
  }
  func.func @transform_2(%arg0: i32) -> (i32, i32) {
    %c0_i32 = arith.constant 0 : i32
    %c0_i32_0 = arith.constant 0 : i32
    %c0_i32_1 = arith.constant 0 : i32
    return %c0_i32, %c0_i32_0 : i32, i32
  }
  func.func @transform_3(%arg0: i32) -> (i32, i32) {
    %c0_i32 = arith.constant 0 : i32
    %c0_i32_0 = arith.constant 0 : i32
    %c0_i32_1 = arith.constant 0 : i32
    return %c0_i32, %c0_i32_0 : i32, i32
  }
  func.func @transform_4(%arg0: i32) -> (i32, i32) {
    %c0_i32 = arith.constant 0 : i32
    %c0_i32_0 = arith.constant 0 : i32
    %c0_i32_1 = arith.constant 0 : i32
    return %c0_i32, %c0_i32_0 : i32, i32
  }
  func.func @transform_5(%arg0: i32) -> (i32, i32) {
    %c0_i32 = arith.constant 0 : i32
    %c0_i32_0 = arith.constant 0 : i32
    %c0_i32_1 = arith.constant 0 : i32
    return %c0_i32, %c0_i32_0 : i32, i32
  }
  func.func @transform_6(%arg0: i32) -> (i32, i32) {
    %c0_i32 = arith.constant 0 : i32
    %c0_i32_0 = arith.constant 0 : i32
    %c0_i32_1 = arith.constant 0 : i32
    return %c0_i32, %c0_i32_0 : i32, i32
  }
  func.func @transform_7(%arg0: i32) -> (i32, i32) {
    %c0_i32 = arith.constant 0 : i32
    %c0_i32_0 = arith.constant 0 : i32
    return %arg0, %c0_i32 : i32, i32
  }
}

</mosaic_0001>

<llo_original>
// kernel: actor_forward.1
$region0: #{actor_forward.1}
  #allocation0 [shape = 'u32[]', space=smem, size = 0x4, offset = 0x4, fixed_abs, tag = 'smem constant byte address 0x4 - core index']
  #allocation1 [shape = 'u32[144,128]{1,0:T(1,128)}', space=vmem, size = 0x12000, scoped, tag = 'internal scratch']
  %s0 = inlined_call_operand.vmem [shape: f32[8,32], index: 0, kind: input, shape index: {}]
  %s1 = inlined_call_operand.vmem [shape: f32[32,64], index: 1, kind: input, shape index: {}]
  %s2 = inlined_call_operand.vmem [shape: f32[3,64], index: 2, kind: input, shape index: {}]
  %s3 = inlined_call_operand.vmem [shape: f32[64,32], index: 3, kind: input, shape index: {}]
  %s4 = inlined_call_operand.vmem [shape: f32[3,32], index: 4, kind: input, shape index: {}]
  %s5 = inlined_call_operand.vmem [shape: f32[32,8], index: 5, kind: input, shape index: {}]
  %s6 = inlined_call_operand.vmem [shape: f32[1,8], index: 6, kind: input, shape index: {}]
  %s7 = inlined_call_operand.hbm [shape: f32[8,8], index: 7, kind: output, shape index: {}]
  %s8 = sld [smem:[#allocation0]]
  $region38: #{actor_forward.1} parent=0
    _
  %s10 = ssub.s32 1, %s8
  %s11 = scalar_select 0, %s10, %s8
  $region1: #{actor_forward.1} parent=0
    #allocation2 [shape = 'u8[4096]{0}', space=vmem, size = 0x1000, scoped, tag = 'output window, operand 0, single buffered']
    #allocation3 [shape = 's32[1]{0}', space=sflag, size = 0x4, scoped, tag = 'scoped memory for actor_forward.1']
    %12 = vsyncpa [#allocation3], 0
    // Predicated region
    $region2: #{actor_forward.1} parent=1 // pred_check
      _
    $region3: #{actor_forward.1} parent=1 // pred_check_branch
      %14 = sbr.rel (0) target = $region5
    $region4: #{actor_forward.1} parent=1 // pred_region
      _
    $region5: #{actor_forward.1} parent=1 // pred_fallthru
      _
    // Predicated region
    $region6: #{actor_forward.1} parent=1 // pred_check
      _
    $region7: #{actor_forward.1} parent=1 // pred_check_branch
      %16 = sbr.rel (0) target = $region9
    $region8: #{actor_forward.1} parent=1 // pred_region
      _
    $region9: #{actor_forward.1} parent=1 // pred_fallthru
      _
    // Predicated region
    $region10: #{actor_forward.1} parent=1 // pred_check
      _
    $region11: #{actor_forward.1} parent=1 // pred_check_branch
      %18 = sbr.rel (0) target = $region13
    $region12: #{actor_forward.1} parent=1 // pred_region
      _
    $region13: #{actor_forward.1} parent=1 // pred_fallthru
      _
    // Predicated region
    $region14: #{actor_forward.1} parent=1 // pred_check
      _
    $region15: #{actor_forward.1} parent=1 // pred_check_branch
      %20 = sbr.rel (0) target = $region17
    $region16: #{actor_forward.1} parent=1 // pred_region
      _
    $region17: #{actor_forward.1} parent=1 // pred_fallthru
      _
    // Predicated region
    $region18: #{actor_forward.1} parent=1 // pred_check
      _
    $region19: #{actor_forward.1} parent=1 // pred_check_branch
      %22 = sbr.rel (0) target = $region21
    $region20: #{actor_forward.1} parent=1 // pred_region
      _
    $region21: #{actor_forward.1} parent=1 // pred_fallthru
      _
    // Predicated region
    $region22: #{actor_forward.1} parent=1 // pred_check
      _
    $region23: #{actor_forward.1} parent=1 // pred_check_branch
      %24 = sbr.rel (0) target = $region25
    $region24: #{actor_forward.1} parent=1 // pred_region
      _
    $region25: #{actor_forward.1} parent=1 // pred_fallthru
      _
    // Predicated region
    $region26: #{actor_forward.1} parent=1 // pred_check
      _
    $region27: #{actor_forward.1} parent=1 // pred_check_branch
      %26 = sbr.rel (0) target = $region29
    $region28: #{actor_forward.1} parent=1 // pred_region
      _
    $region29: #{actor_forward.1} parent=1 // pred_fallthru
      _
    %v27 = vld [vmem:[%s0] sm:$0xff]
    %v28 = vld [vmem:[%s1] sm:$0xff]
    %v29 = vld [vmem:[%s1 + $0x8] sm:$0xff]
    %v30 = vld [vmem:[%s1 + $0x10] sm:$0xff]
    %v31 = vld [vmem:[%s1 + $0x18] sm:$0xff]
    %v32 = vld [vmem:[%s2] sm:$0x1]
    %v33 = vlaneseq
    %v34 = vshrl.u32 %v33, 7
    %v35 = vsub.s32 0, %v34
    %v36 = vrot.slane %v32, %v35
    %vm37 = vcmask 261120
    %v39 = vsel %vm37, %v27, 0
    %41 = vmatprep.subr.mxu0 0.0
    %v42 = vand.u32 %v28, 4294901760
    %43 = vmatpush1.msra.mxu0 %v42
    %44 = vmatprep.subr.mxu0 0.0
    %v45 = vand.u32 %v29, 4294901760
    %46 = vmatpush1.msra.mxu0 %v45
    %47 = vmatprep.subr.mxu0 0.0
    %v48 = vand.u32 %v30, 4294901760
    %49 = vmatpush1.msra.mxu0 %v48
    %50 = vmatprep.subr.mxu0 0.0
    %v51 = vand.u32 %v31, 4294901760
    %52 = vmatpush1.msra.mxu0 %v51
    %53 = vmatprep.subr.mxu0 0.0
    %54 = vmatpush1.msra.mxu0 0.0
    %55 = vmatprep.subr.mxu0 0.0
    %56 = vmatpush1.msra.mxu0 0.0
    %57 = vmatprep.subr.mxu0 0.0
    %58 = vmatpush1.msra.mxu0 0.0
    %59 = vmatprep.subr.mxu0 0.0
    %60 = vmatpush1.msra.mxu0 0.0
    %61 = vmatprep.subr.mxu0 0.0
    %62 = vmatpush1.msra.mxu0 0.0
    %63 = vmatprep.subr.mxu0 0.0
    %64 = vmatpush1.msra.mxu0 0.0
    %65 = vmatprep.subr.mxu0 0.0
    %66 = vmatpush1.msra.mxu0 0.0
    %67 = vmatprep.subr.mxu0 0.0
    %68 = vmatpush1.msra.mxu0 0.0
    %69 = vmatprep.subr.mxu0 0.0
    %70 = vmatpush1.msra.mxu0 0.0
    %71 = vmatprep.subr.mxu0 0.0
    %72 = vmatpush1.msra.mxu0 0.0
    %73 = vmatprep.subr.mxu0 0.0
    %74 = vmatpush1.msra.mxu0 0.0
    %75 = vmatprep.subr.mxu0 0.0
    %76 = vmatpush1.msra.mxu0 0.0
    %77 = vmatprep.subr.mxu0 0.0
    %78 = vmatpush1.msra.mxu0 0.0
    %79 = vmatprep.subr.mxu0 0.0
    %80 = vmatpush1.msra.mxu0 0.0
    %81 = vmatprep.subr.mxu0 0.0
    %82 = vmatpush1.msra.mxu0 0.0
    %83 = vmatprep.subr.mxu0 0.0
    %84 = vmatpush1.msra.mxu0 0.0
    %85 = vmatprep.subr.mxu0 0.0
    %86 = vmatpush1.msra.mxu0 0.0
    %87 = vmatprep.subr.mxu0 0.0
    %88 = vmatpush1.msra.mxu0 0.0
    %89 = vmatprep.subr.mxu0 0.0
    %90 = vmatpush1.msra.mxu0 0.0
    %91 = vmatprep.subr.mxu0 0.0
    %92 = vmatpush1.msra.mxu0 0.0
    %93 = vmatprep.subr.mxu0 0.0
    %94 = vmatpush1.msra.mxu0 0.0
    %95 = vmatprep.subr.mxu0 0.0
    %96 = vmatpush1.msra.mxu0 0.0
    %97 = vmatprep.subr.mxu0 0.0
    %98 = vmatpush1.msra.mxu0 0.0
    %99 = vmatprep.subr.mxu0 0.0
    %100 = vmatpush1.msra.mxu0 0.0
    %101 = vmatprep.subr.mxu0 0.0
    %102 = vmatpush1.msra.mxu0 0.0
    %103 = vmatprep.subr.mxu0 0.0
    %104 = vmatpush1.msra.mxu0 0.0
    %105 = vmatprep.subr.mxu0 0.0
    %106 = vmatpush1.msra.mxu0 0.0
    %107 = vmatprep.subr.mxu0 0.0
    %108 = vmatpush1.msra.mxu0 0.0
    %109 = vmatprep.mubr.f32.mxu0 0.0
    %v110 = vand.u32 %v39, 4294901760
    %v111 = vsub.f32 %v39, %v110
    %v112 = vand.u32 %v111, 4294901760
    %v113 = vsub.f32 %v111, %v112
    %v114 = vand.u32 %v113, 4294901760
    %115 = vmatmul.mubr.f32.gmra.mrb[0].mxu0 %v114
    %v116 = vpop.f32.mrb[0].mxu0
    %v117 = vadd.f32 %v36, %v116
    %v118 = vpop.f32.mrb[0].mxu0
    %119 = vdwg.mxu0
    %120 = vmatprep.subr.mxu0 0.0
    %v121 = vand.u32 %v28, 4294901760
    %v122 = vsub.f32 %v28, %v121
    %v123 = vand.u32 %v122, 4294901760
    %v124 = vsub.f32 %v122, %v123
    %v125 = vand.u32 %v124, 4294901760
    %126 = vmatpush1.msra.mxu0 %v125
    %127 = vmatprep.subr.mxu0 0.0
    %v128 = vand.u32 %v29, 4294901760
    %v129 = vsub.f32 %v29, %v128
    %v130 = vand.u32 %v129, 4294901760
    %v131 = vsub.f32 %v129, %v130
    %v132 = vand.u32 %v131, 4294901760
    %133 = vmatpush1.msra.mxu0 %v132
    %134 = vmatprep.subr.mxu0 0.0
    %v135 = vand.u32 %v30, 4294901760
    %v136 = vsub.f32 %v30, %v135
    %v137 = vand.u32 %v136, 4294901760
    %v138 = vsub.f32 %v136, %v137
    %v139 = vand.u32 %v138, 4294901760
    %140 = vmatpush1.msra.mxu0 %v139
    %141 = vmatprep.subr.mxu0 0.0
    %v142 = vand.u32 %v31, 4294901760
    %v143 = vsub.f32 %v31, %v142
    %v144 = vand.u32 %v143, 4294901760
    %v145 = vsub.f32 %v143, %v144
    %v146 = vand.u32 %v145, 4294901760
    %147 = vmatpush1.msra.mxu0 %v146
    %148 = vmatprep.subr.mxu0 0.0
    %149 = vmatpush1.msra.mxu0 0.0
    %150 = vmatprep.subr.mxu0 0.0
    %151 = vmatpush1.msra.mxu0 0.0
    %152 = vmatprep.subr.mxu0 0.0
    %153 = vmatpush1.msra.mxu0 0.0
    %154 = vmatprep.subr.mxu0 0.0
    %155 = vmatpush1.msra.mxu0 0.0
    %156 = vmatprep.subr.mxu0 0.0
    %157 = vmatpush1.msra.mxu0 0.0
    %158 = vmatprep.subr.mxu0 0.0
    %159 = vmatpush1.msra.mxu0 0.0
    %160 = vmatprep.subr.mxu0 0.0
    %161 = vmatpush1.msra.mxu0 0.0
    %162 = vmatprep.subr.mxu0 0.0
    %163 = vmatpush1.msra.mxu0 0.0
    %164 = vmatprep.subr.mxu0 0.0
    %165 = vmatpush1.msra.mxu0 0.0
    %166 = vmatprep.subr.mxu0 0.0
    %167 = vmatpush1.msra.mxu0 0.0
    %168 = vmatprep.subr.mxu0 0.0
    %169 = vmatpush1.msra.mxu0 0.0
    %170 = vmatprep.subr.mxu0 0.0
    %171 = vmatpush1.msra.mxu0 0.0
    %172 = vmatprep.subr.mxu0 0.0
    %173 = vmatpush1.msra.mxu0 0.0
    %174 = vmatprep.subr.mxu0 0.0
    %175 = vmatpush1.msra.mxu0 0.0
    %176 = vmatprep.subr.mxu0 0.0
    %177 = vmatpush1.msra.mxu0 0.0
    %178 = vmatprep.subr.mxu0 0.0
    %179 = vmatpush1.msra.mxu0 0.0
    %180 = vmatprep.subr.mxu0 0.0
    %181 = vmatpush1.msra.mxu0 0.0
    %182 = vmatprep.subr.mxu0 0.0
    %183 = vmatpush1.msra.mxu0 0.0
    %184 = vmatprep.subr.mxu0 0.0
    %185 = vmatpush1.msra.mxu0 0.0
    %186 = vmatprep.subr.mxu0 0.0
    %187 = vmatpush1.msra.mxu0 0.0
    %188 = vmatprep.subr.mxu0 0.0
    %189 = vmatpush1.msra.mxu0 0.0
    %190 = vmatprep.subr.mxu0 0.0
    %191 = vmatpush1.msra.mxu0 0.0
    %192 = vmatprep.subr.mxu0 0.0
    %193 = vmatpush1.msra.mxu0 0.0
    %194 = vmatprep.subr.mxu0 0.0
    %195 = vmatpush1.msra.mxu0 0.0
    %196 = vmatprep.subr.mxu0 0.0
    %197 = vmatpush1.msra.mxu0 0.0
    %198 = vmatprep.subr.mxu0 0.0
    %199 = vmatpush1.msra.mxu0 0.0
    %200 = vmatprep.subr.mxu0 0.0
    %201 = vmatpush1.msra.mxu0 0.0
    %202 = vmatprep.subr.mxu0 0.0
    %203 = vmatpush1.msra.mxu0 0.0
    %204 = vmatprep.mubr.f32.mxu0 0.0
    %v205 = vand.u32 %v39, 4294901760
    %206 = vmatmul.mubr.f32.gmra.mrb[0].mxu0 %v205
    %v207 = vpop.f32.mrb[0].mxu0
    %v208 = vadd.f32 %v117, %v207
    %v209 = vpop.f32.mrb[0].mxu0
    %210 = vdwg.mxu0
    %211 = vmatprep.subr.mxu0 0.0
    %v212 = vand.u32 %v28, 4294901760
    %v213 = vsub.f32 %v28, %v212
    %214 = vmatpush1.msra.mxu0 %v213
    %215 = vmatprep.subr.mxu0 0.0
    %v216 = vand.u32 %v29, 4294901760
    %v217 = vsub.f32 %v29, %v216
    %218 = vmatpush1.msra.mxu0 %v217
    %219 = vmatprep.subr.mxu0 0.0
    %v220 = vand.u32 %v30, 4294901760
    %v221 = vsub.f32 %v30, %v220
    %222 = vmatpush1.msra.mxu0 %v221
    %223 = vmatprep.subr.mxu0 0.0
    %v224 = vand.u32 %v31, 4294901760
    %v225 = vsub.f32 %v31, %v224
    %226 = vmatpush1.msra.mxu0 %v225
    %227 = vmatprep.subr.mxu0 0.0
    %228 = vmatpush1.msra.mxu0 0.0
    %229 = vmatprep.subr.mxu0 0.0
    %230 = vmatpush1.msra.mxu0 0.0
    %231 = vmatprep.subr.mxu0 0.0
    %232 = vmatpush1.msra.mxu0 0.0
    %233 = vmatprep.subr.mxu0 0.0
    %234 = vmatpush1.msra.mxu0 0.0
    %235 = vmatprep.subr.mxu0 0.0
    %236 = vmatpush1.msra.mxu0 0.0
    %237 = vmatprep.subr.mxu0 0.0
    %238 = vmatpush1.msra.mxu0 0.0
    %239 = vmatprep.subr.mxu0 0.0
    %240 = vmatpush1.msra.mxu0 0.0
    %241 = vmatprep.subr.mxu0 0.0
    %242 = vmatpush1.msra.mxu0 0.0
    %243 = vmatprep.subr.mxu0 0.0
    %244 = vmatpush1.msra.mxu0 0.0
    %245 = vmatprep.subr.mxu0 0.0
    %246 = vmatpush1.msra.mxu0 0.0
    %247 = vmatprep.subr.mxu0 0.0
    %248 = vmatpush1.msra.mxu0 0.0
    %249 = vmatprep.subr.mxu0 0.0
    %250 = vmatpush1.msra.mxu0 0.0
    %251 = vmatprep.subr.mxu0 0.0
    %252 = vmatpush1.msra.mxu0 0.0
    %253 = vmatprep.subr.mxu0 0.0
    %254 = vmatpush1.msra.mxu0 0.0
    %255 = vmatprep.subr.mxu0 0.0
    %256 = vmatpush1.msra.mxu0 0.0
    %257 = vmatprep.subr.mxu0 0.0
    %258 = vmatpush1.msra.mxu0 0.0
    %259 = vmatprep.subr.mxu0 0.0
    %260 = vmatpush1.msra.mxu0 0.0
    %261 = vmatprep.subr.mxu0 0.0
    %262 = vmatpush1.msra.mxu0 0.0
    %263 = vmatprep.subr.mxu0 0.0
    %264 = vmatpush1.msra.mxu0 0.0
    %265 = vmatprep.subr.mxu0 0.0
    %266 = vmatpush1.msra.mxu0 0.0
    %267 = vmatprep.subr.mxu0 0.0
    %268 = vmatpush1.msra.mxu0 0.0
    %269 = vmatprep.subr.mxu0 0.0
    %270 = vmatpush1.msra.mxu0 0.0
    %271 = vmatprep.subr.mxu0 0.0
    %272 = vmatpush1.msra.mxu0 0.0
    %273 = vmatprep.subr.mxu0 0.0
    %274 = vmatpush1.msra.mxu0 0.0
    %275 = vmatprep.subr.mxu0 0.0
    %276 = vmatpush1.msra.mxu0 0.0
    %277 = vmatprep.subr.mxu0 0.0
    %278 = vmatpush1.msra.mxu0 0.0
    %279 = vmatprep.subr.mxu0 0.0
    %280 = vmatpush1.msra.mxu0 0.0
    %281 = vmatprep.subr.mxu0 0.0
    %282 = vmatpush1.msra.mxu0 0.0
    %283 = vmatprep.mubr.f32.mxu0 0.0
    %v284 = vand.u32 %v39, 4294901760
    %v285 = vsub.f32 %v39, %v284
    %286 = vmatmul.mubr.f32.gmra.mrb[0].mxu0 %v285
    %v287 = vpop.f32.mrb[0].mxu0
    %v288 = vadd.f32 %v208, %v287
    %v289 = vpop.f32.mrb[0].mxu0
    %290 = vdwg.mxu0
    %291 = vmatprep.subr.mxu0 0.0
    %v292 = vand.u32 %v28, 4294901760
    %293 = vmatpush1.msra.mxu0 %v292
    %294 = vmatprep.subr.mxu0 0.0
    %v295 = vand.u32 %v29, 4294901760
    %296 = vmatpush1.msra.mxu0 %v295
    %297 = vmatprep.subr.mxu0 0.0
    %v298 = vand.u32 %v30, 4294901760
    %299 = vmatpush1.msra.mxu0 %v298
    %300 = vmatprep.subr.mxu0 0.0
    %v301 = vand.u32 %v31, 4294901760
    %302 = vmatpush1.msra.mxu0 %v301
    %303 = vmatprep.subr.mxu0 0.0
    %304 = vmatpush1.msra.mxu0 0.0
    %305 = vmatprep.subr.mxu0 0.0
    %306 = vmatpush1.msra.mxu0 0.0
    %307 = vmatprep.subr.mxu0 0.0
    %308 = vmatpush1.msra.mxu0 0.0
    %309 = vmatprep.subr.mxu0 0.0
    %310 = vmatpush1.msra.mxu0 0.0
    %311 = vmatprep.subr.mxu0 0.0
    %312 = vmatpush1.msra.mxu0 0.0
    %313 = vmatprep.subr.mxu0 0.0
    %314 = vmatpush1.msra.mxu0 0.0
    %315 = vmatprep.subr.mxu0 0.0
    %316 = vmatpush1.msra.mxu0 0.0
    %317 = vmatprep.subr.mxu0 0.0
    %318 = vmatpush1.msra.mxu0 0.0
    %319 = vmatprep.subr.mxu0 0.0
    %320 = vmatpush1.msra.mxu0 0.0
    %321 = vmatprep.subr.mxu0 0.0
    %322 = vmatpush1.msra.mxu0 0.0
    %323 = vmatprep.subr.mxu0 0.0
    %324 = vmatpush1.msra.mxu0 0.0
    %325 = vmatprep.subr.mxu0 0.0
    %326 = vmatpush1.msra.mxu0 0.0
    %327 = vmatprep.subr.mxu0 0.0
    %328 = vmatpush1.msra.mxu0 0.0
    %329 = vmatprep.subr.mxu0 0.0
    %330 = vmatpush1.msra.mxu0 0.0
    %331 = vmatprep.subr.mxu0 0.0
    %332 = vmatpush1.msra.mxu0 0.0
    %333 = vmatprep.subr.mxu0 0.0
    %334 = vmatpush1.msra.mxu0 0.0
    %335 = vmatprep.subr.mxu0 0.0
    %336 = vmatpush1.msra.mxu0 0.0
    %337 = vmatprep.subr.mxu0 0.0
    %338 = vmatpush1.msra.mxu0 0.0
    %339 = vmatprep.subr.mxu0 0.0
    %340 = vmatpush1.msra.mxu0 0.0
    %341 = vmatprep.subr.mxu0 0.0
    %342 = vmatpush1.msra.mxu0 0.0
    %343 = vmatprep.subr.mxu0 0.0
    %344 = vmatpush1.msra.mxu0 0.0
    %345 = vmatprep.subr.mxu0 0.0
    %346 = vmatpush1.msra.mxu0 0.0
    %347 = vmatprep.subr.mxu0 0.0
    %348 = vmatpush1.msra.mxu0 0.0
    %349 = vmatprep.subr.mxu0 0.0
    %350 = vmatpush1.msra.mxu0 0.0
    %351 = vmatprep.subr.mxu0 0.0
    %352 = vmatpush1.msra.mxu0 0.0
    %353 = vmatprep.subr.mxu0 0.0
    %354 = vmatpush1.msra.mxu0 0.0
    %355 = vmatprep.subr.mxu0 0.0
    %356 = vmatpush1.msra.mxu0 0.0
    %357 = vmatprep.subr.mxu0 0.0
    %358 = vmatpush1.msra.mxu0 0.0
    %359 = vmatprep.mubr.f32.mxu0 0.0
    %v360 = vand.u32 %v39, 4294901760
    %v361 = vsub.f32 %v39, %v360
    %v362 = vand.u32 %v361, 4294901760
    %363 = vmatmul.mubr.f32.gmra.mrb[0].mxu0 %v362
    %v364 = vpop.f32.mrb[0].mxu0
    %v365 = vadd.f32 %v288, %v364
    %v366 = vpop.f32.mrb[0].mxu0
    %367 = vdwg.mxu0
    %368 = vmatprep.subr.mxu0 0.0
    %v369 = vand.u32 %v28, 4294901760
    %v370 = vsub.f32 %v28, %v369
    %v371 = vand.u32 %v370, 4294901760
    %372 = vmatpush1.msra.mxu0 %v371
    %373 = vmatprep.subr.mxu0 0.0
    %v374 = vand.u32 %v29, 4294901760
    %v375 = vsub.f32 %v29, %v374
    %v376 = vand.u32 %v375, 4294901760
    %377 = vmatpush1.msra.mxu0 %v376
    %378 = vmatprep.subr.mxu0 0.0
    %v379 = vand.u32 %v30, 4294901760
    %v380 = vsub.f32 %v30, %v379
    %v381 = vand.u32 %v380, 4294901760
    %382 = vmatpush1.msra.mxu0 %v381
    %383 = vmatprep.subr.mxu0 0.0
    %v384 = vand.u32 %v31, 4294901760
    %v385 = vsub.f32 %v31, %v384
    %v386 = vand.u32 %v385, 4294901760
    %387 = vmatpush1.msra.mxu0 %v386
    %388 = vmatprep.subr.mxu0 0.0
    %389 = vmatpush1.msra.mxu0 0.0
    %390 = vmatprep.subr.mxu0 0.0
    %391 = vmatpush1.msra.mxu0 0.0
    %392 = vmatprep.subr.mxu0 0.0
    %393 = vmatpush1.msra.mxu0 0.0
    %394 = vmatprep.subr.mxu0 0.0
    %395 = vmatpush1.msra.mxu0 0.0
    %396 = vmatprep.subr.mxu0 0.0
    %397 = vmatpush1.msra.mxu0 0.0
    %398 = vmatprep.subr.mxu0 0.0
    %399 = vmatpush1.msra.mxu0 0.0
    %400 = vmatprep.subr.mxu0 0.0
    %401 = vmatpush1.msra.mxu0 0.0
    %402 = vmatprep.subr.mxu0 0.0
    %403 = vmatpush1.msra.mxu0 0.0
    %404 = vmatprep.subr.mxu0 0.0
    %405 = vmatpush1.msra.mxu0 0.0
    %406 = vmatprep.subr.mxu0 0.0
    %407 = vmatpush1.msra.mxu0 0.0
    %408 = vmatprep.subr.mxu0 0.0
    %409 = vmatpush1.msra.mxu0 0.0
    %410 = vmatprep.subr.mxu0 0.0
    %411 = vmatpush1.msra.mxu0 0.0
    %412 = vmatprep.subr.mxu0 0.0
    %413 = vmatpush1.msra.mxu0 0.0
    %414 = vmatprep.subr.mxu0 0.0
    %415 = vmatpush1.msra.mxu0 0.0
    %416 = vmatprep.subr.mxu0 0.0
    %417 = vmatpush1.msra.mxu0 0.0
    %418 = vmatprep.subr.mxu0 0.0
    %419 = vmatpush1.msra.mxu0 0.0
    %420 = vmatprep.subr.mxu0 0.0
    %421 = vmatpush1.msra.mxu0 0.0
    %422 = vmatprep.subr.mxu0 0.0
    %423 = vmatpush1.msra.mxu0 0.0
    %424 = vmatprep.subr.mxu0 0.0
    %425 = vmatpush1.msra.mxu0 0.0
    %426 = vmatprep.subr.mxu0 0.0
    %427 = vmatpush1.msra.mxu0 0.0
    %428 = vmatprep.subr.mxu0 0.0
    %429 = vmatpush1.msra.mxu0 0.0
    %430 = vmatprep.subr.mxu0 0.0
    %431 = vmatpush1.msra.mxu0 0.0
    %432 = vmatprep.subr.mxu0 0.0
    %433 = vmatpush1.msra.mxu0 0.0
    %434 = vmatprep.subr.mxu0 0.0
    %435 = vmatpush1.msra.mxu0 0.0
    %436 = vmatprep.subr.mxu0 0.0
    %437 = vmatpush1.msra.mxu0 0.0
    %438 = vmatprep.subr.mxu0 0.0
    %439 = vmatpush1.msra.mxu0 0.0
    %440 = vmatprep.subr.mxu0 0.0
    %441 = vmatpush1.msra.mxu0 0.0
    %442 = vmatprep.subr.mxu0 0.0
    %443 = vmatpush1.msra.mxu0 0.0
    %444 = vmatprep.mubr.f32.mxu0 0.0
    %v445 = vand.u32 %v39, 4294901760
    %446 = vmatmul.mubr.f32.gmra.mrb[0].mxu0 %v445
    %v447 = vpop.f32.mrb[0].mxu0
    %v448 = vadd.f32 %v365, %v447
    %v449 = vpop.f32.mrb[0].mxu0
    %450 = vdwg.mxu0
    %451 = vmatprep.subr.mxu0 0.0
    %v452 = vand.u32 %v28, 4294901760
    %453 = vmatpush1.msra.mxu0 %v452
    %454 = vmatprep.subr.mxu0 0.0
    %v455 = vand.u32 %v29, 4294901760
    %456 = vmatpush1.msra.mxu0 %v455
    %457 = vmatprep.subr.mxu0 0.0
    %v458 = vand.u32 %v30, 4294901760
    %459 = vmatpush1.msra.mxu0 %v458
    %460 = vmatprep.subr.mxu0 0.0
    %v461 = vand.u32 %v31, 4294901760
    %462 = vmatpush1.msra.mxu0 %v461
    %463 = vmatprep.subr.mxu0 0.0
    %464 = vmatpush1.msra.mxu0 0.0
    %465 = vmatprep.subr.mxu0 0.0
    %466 = vmatpush1.msra.mxu0 0.0
    %467 = vmatprep.subr.mxu0 0.0
    %468 = vmatpush1.msra.mxu0 0.0
    %469 = vmatprep.subr.mxu0 0.0
    %470 = vmatpush1.msra.mxu0 0.0
    %471 = vmatprep.subr.mxu0 0.0
    %472 = vmatpush1.msra.mxu0 0.0
    %473 = vmatprep.subr.mxu0 0.0
    %474 = vmatpush1.msra.mxu0 0.0
    %475 = vmatprep.subr.mxu0 0.0
    %476 = vmatpush1.msra.mxu0 0.0
    %477 = vmatprep.subr.mxu0 0.0
    %478 = vmatpush1.msra.mxu0 0.0
    %479 = vmatprep.subr.mxu0 0.0
    %480 = vmatpush1.msra.mxu0 0.0
    %481 = vmatprep.subr.mxu0 0.0
    %482 = vmatpush1.msra.mxu0 0.0
    %483 = vmatprep.subr.mxu0 0.0
    %484 = vmatpush1.msra.mxu0 0.0
    %485 = vmatprep.subr.mxu0 0.0
    %486 = vmatpush1.msra.mxu0 0.0
    %487 = vmatprep.subr.mxu0 0.0
    %488 = vmatpush1.msra.mxu0 0.0
    %489 = vmatprep.subr.mxu0 0.0
    %490 = vmatpush1.msra.mxu0 0.0
    %491 = vmatprep.subr.mxu0 0.0
    %492 = vmatpush1.msra.mxu0 0.0
    %493 = vmatprep.subr.mxu0 0.0
    %494 = vmatpush1.msra.mxu0 0.0
    %495 = vmatprep.subr.mxu0 0.0
    %496 = vmatpush1.msra.mxu0 0.0
    %497 = vmatprep.subr.mxu0 0.0
    %498 = vmatpush1.msra.mxu0 0.0
    %499 = vmatprep.subr.mxu0 0.0
    %500 = vmatpush1.msra.mxu0 0.0
    %501 = vmatprep.subr.mxu0 0.0
    %502 = vmatpush1.msra.mxu0 0.0
    %503 = vmatprep.subr.mxu0 0.0
    %504 = vmatpush1.msra.mxu0 0.0
    %505 = vmatprep.subr.mxu0 0.0
    %506 = vmatpush1.msra.mxu0 0.0
    %507 = vmatprep.subr.mxu0 0.0
    %508 = vmatpush1.msra.mxu0 0.0
    %509 = vmatprep.subr.mxu0 0.0
    %510 = vmatpush1.msra.mxu0 0.0
    %511 = vmatprep.subr.mxu0 0.0
    %512 = vmatpush1.msra.mxu0 0.0
    %513 = vmatprep.subr.mxu0 0.0
    %514 = vmatpush1.msra.mxu0 0.0
    %515 = vmatprep.subr.mxu0 0.0
    %516 = vmatpush1.msra.mxu0 0.0
    %517 = vmatprep.subr.mxu0 0.0
    %518 = vmatpush1.msra.mxu0 0.0
    %519 = vmatprep.mubr.f32.mxu0 0.0
    %v520 = vand.u32 %v39, 4294901760
    %521 = vmatmul.mubr.f32.gmra.mrb[0].mxu0 %v520
    %v522 = vpop.f32.mrb[0].mxu0
    %v523 = vadd.f32 %v448, %v522
    %v524 = vpop.f32.mrb[0].mxu0
    %525 = vdwg.mxu0
    %v526 = vld [vmem:[%s2 + $0x1] sm:$0x1]
    %v527 = vld [vmem:[%s2 + $0x2] sm:$0x1]
    %vm528 = vcmask 523264
    %v529 = vsel %vm528, %v523, 0.0
    %530 = vadd.xlane.f32.xlu0 %v529
    %v531 = vpop.xlane.xlu0 %530
    %v532 = vrcp.pop 64.0
    %v533 = vmul.f32 %v531, %v532
    %v534 = vsub.f32 %v523, %v533
    %v535 = vmul.f32 %v534, %v534
    %v536 = vsel %vm528, %v535, 0.0
    %537 = vadd.xlane.f32.xlu0 %v536
    %v538 = vpop.xlane.xlu0 %537
    %v539 = vmul.f32 %v538, %v532
    %v540 = vadd.f32 %v539, 1e-05
    %v541 = vrsqrt.pop %v540
    %v542 = vmul.f32 %v534, %v541
    %v543 = vlaneseq
    %v544 = vshrl.u32 %v543, 7
    %v545 = vsub.s32 0, %v544
    %v546 = vrot.slane %v526, %v545
    %v547 = vmul.f32 %v542, %v546
    %v548 = vlaneseq
    %v549 = vshrl.u32 %v548, 7
    %v550 = vsub.s32 0, %v549
    %v551 = vrot.slane %v527, %v550
    %v552 = vadd.f32 %v547, %v551
    %v553 = vmax.f32 %v552, 0.0
    %v554 = vld [vmem:[%s3] sm:$0xff]
    %v555 = vld [vmem:[%s3 + $0x8] sm:$0xff]
    %v556 = vld [vmem:[%s3 + $0x10] sm:$0xff]
    %v557 = vld [vmem:[%s3 + $0x18] sm:$0xff]
    %v558 = vld [vmem:[%s3 + $0x20] sm:$0xff]
    %v559 = vld [vmem:[%s3 + $0x28] sm:$0xff]
    %v560 = vld [vmem:[%s3 + $0x30] sm:$0xff]
    %v561 = vld [vmem:[%s3 + $0x38] sm:$0xff]
    %v562 = vld [vmem:[%s4] sm:$0x1]
    %v563 = vlaneseq
    %v564 = vshrl.u32 %v563, 7
    %v565 = vsub.s32 0, %v564
    %v566 = vrot.slane %v562, %v565
    %v568 = vsel %vm528, %v553, 0
    %570 = vmatprep.subr.mxu0 0.0
    %v571 = vand.u32 %v554, 4294901760
    %572 = vmatpush1.msra.mxu0 %v571
    %573 = vmatprep.subr.mxu0 0.0
    %v574 = vand.u32 %v555, 4294901760
    %575 = vmatpush1.msra.mxu0 %v574
    %576 = vmatprep.subr.mxu0 0.0
    %v577 = vand.u32 %v556, 4294901760
    %578 = vmatpush1.msra.mxu0 %v577
    %579 = vmatprep.subr.mxu0 0.0
    %v580 = vand.u32 %v557, 4294901760
    %581 = vmatpush1.msra.mxu0 %v580
    %582 = vmatprep.subr.mxu0 0.0
    %v583 = vand.u32 %v558, 4294901760
    %584 = vmatpush1.msra.mxu0 %v583
    %585 = vmatprep.subr.mxu0 0.0
    %v586 = vand.u32 %v559, 4294901760
    %587 = vmatpush1.msra.mxu0 %v586
    %588 = vmatprep.subr.mxu0 0.0
    %v589 = vand.u32 %v560, 4294901760
    %590 = vmatpush1.msra.mxu0 %v589
    %591 = vmatprep.subr.mxu0 0.0
    %v592 = vand.u32 %v561, 4294901760
    %593 = vmatpush1.msra.mxu0 %v592
    %594 = vmatprep.subr.mxu0 0.0
    %595 = vmatpush1.msra.mxu0 0.0
    %596 = vmatprep.subr.mxu0 0.0
    %597 = vmatpush1.msra.mxu0 0.0
    %598 = vmatprep.subr.mxu0 0.0
    %599 = vmatpush1.msra.mxu0 0.0
    %600 = vmatprep.subr.mxu0 0.0
    %601 = vmatpush1.msra.mxu0 0.0
    %602 = vmatprep.subr.mxu0 0.0
    %603 = vmatpush1.msra.mxu0 0.0
    %604 = vmatprep.subr.mxu0 0.0
    %605 = vmatpush1.msra.mxu0 0.0
    %606 = vmatprep.subr.mxu0 0.0
    %607 = vmatpush1.msra.mxu0 0.0
    %608 = vmatprep.subr.mxu0 0.0
    %609 = vmatpush1.msra.mxu0 0.0
    %610 = vmatprep.subr.mxu0 0.0
    %611 = vmatpush1.msra.mxu0 0.0
    %612 = vmatprep.subr.mxu0 0.0
    %613 = vmatpush1.msra.mxu0 0.0
    %614 = vmatprep.subr.mxu0 0.0
    %615 = vmatpush1.msra.mxu0 0.0
    %616 = vmatprep.subr.mxu0 0.0
    %617 = vmatpush1.msra.mxu0 0.0
    %618 = vmatprep.subr.mxu0 0.0
    %619 = vmatpush1.msra.mxu0 0.0
    %620 = vmatprep.subr.mxu0 0.0
    %621 = vmatpush1.msra.mxu0 0.0
    %622 = vmatprep.subr.mxu0 0.0
    %623 = vmatpush1.msra.mxu0 0.0
    %624 = vmatprep.subr.mxu0 0.0
    %625 = vmatpush1.msra.mxu0 0.0
    %626 = vmatprep.subr.mxu0 0.0
    %627 = vmatpush1.msra.mxu0 0.0
    %628 = vmatprep.subr.mxu0 0.0
    %629 = vmatpush1.msra.mxu0 0.0
    %630 = vmatprep.subr.mxu0 0.0
    %631 = vmatpush1.msra.mxu0 0.0
    %632 = vmatprep.subr.mxu0 0.0
    %633 = vmatpush1.msra.mxu0 0.0
    %634 = vmatprep.subr.mxu0 0.0
    %635 = vmatpush1.msra.mxu0 0.0
    %636 = vmatprep.subr.mxu0 0.0
    %637 = vmatpush1.msra.mxu0 0.0
    %638 = vmatprep.subr.mxu0 0.0
    %639 = vmatpush1.msra.mxu0 0.0
    %640 = vmatprep.subr.mxu0 0.0
    %641 = vmatpush1.msra.mxu0 0.0
    %642 = vmatprep.mubr.f32.mxu0 0.0
    %v643 = vand.u32 %v568, 4294901760
    %v644 = vsub.f32 %v568, %v643
    %v645 = vand.u32 %v644, 4294901760
    %v646 = vsub.f32 %v644, %v645
    %v647 = vand.u32 %v646, 4294901760
    %648 = vmatmul.mubr.f32.gmra.mrb[0].mxu0 %v647
    %v649 = vpop.f32.mrb[0].mxu0
    %v650 = vadd.f32 %v566, %v649
    %v651 = vpop.f32.mrb[0].mxu0
    %652 = vdwg.mxu0
    %653 = vmatprep.subr.mxu0 0.0
    %v654 = vand.u32 %v554, 4294901760
    %v655 = vsub.f32 %v554, %v654
    %v656 = vand.u32 %v655, 4294901760
    %v657 = vsub.f32 %v655, %v656
    %v658 = vand.u32 %v657, 4294901760
    %659 = vmatpush1.msra.mxu0 %v658
    %660 = vmatprep.subr.mxu0 0.0
    %v661 = vand.u32 %v555, 4294901760
    %v662 = vsub.f32 %v555, %v661
    %v663 = vand.u32 %v662, 4294901760
    %v664 = vsub.f32 %v662, %v663
    %v665 = vand.u32 %v664, 4294901760
    %666 = vmatpush1.msra.mxu0 %v665
    %667 = vmatprep.subr.mxu0 0.0
    %v668 = vand.u32 %v556, 4294901760
    %v669 = vsub.f32 %v556, %v668
    %v670 = vand.u32 %v669, 4294901760
    %v671 = vsub.f32 %v669, %v670
    %v672 = vand.u32 %v671, 4294901760
    %673 = vmatpush1.msra.mxu0 %v672
    %674 = vmatprep.subr.mxu0 0.0
    %v675 = vand.u32 %v557, 4294901760
    %v676 = vsub.f32 %v557, %v675
    %v677 = vand.u32 %v676, 4294901760
    %v678 = vsub.f32 %v676, %v677
    %v679 = vand.u32 %v678, 4294901760
    %680 = vmatpush1.msra.mxu0 %v679
    %681 = vmatprep.subr.mxu0 0.0
    %v682 = vand.u32 %v558, 4294901760
    %v683 = vsub.f32 %v558, %v682
    %v684 = vand.u32 %v683, 4294901760
    %v685 = vsub.f32 %v683, %v684
    %v686 = vand.u32 %v685, 4294901760
    %687 = vmatpush1.msra.mxu0 %v686
    %688 = vmatprep.subr.mxu0 0.0
    %v689 = vand.u32 %v559, 4294901760
    %v690 = vsub.f32 %v559, %v689
    %v691 = vand.u32 %v690, 4294901760
    %v692 = vsub.f32 %v690, %v691
    %v693 = vand.u32 %v692, 4294901760
    %694 = vmatpush1.msra.mxu0 %v693
    %695 = vmatprep.subr.mxu0 0.0
    %v696 = vand.u32 %v560, 4294901760
    %v697 = vsub.f32 %v560, %v696
    %v698 = vand.u32 %v697, 4294901760
    %v699 = vsub.f32 %v697, %v698
    %v700 = vand.u32 %v699, 4294901760
    %701 = vmatpush1.msra.mxu0 %v700
    %702 = vmatprep.subr.mxu0 0.0
    %v703 = vand.u32 %v561, 4294901760
    %v704 = vsub.f32 %v561, %v703
    %v705 = vand.u32 %v704, 4294901760
    %v706 = vsub.f32 %v704, %v705
    %v707 = vand.u32 %v706, 4294901760
    %708 = vmatpush1.msra.mxu0 %v707
    %709 = vmatprep.subr.mxu0 0.0
    %710 = vmatpush1.msra.mxu0 0.0
    %711 = vmatprep.subr.mxu0 0.0
    %712 = vmatpush1.msra.mxu0 0.0
    %713 = vmatprep.subr.mxu0 0.0
    %714 = vmatpush1.msra.mxu0 0.0
    %715 = vmatprep.subr.mxu0 0.0
    %716 = vmatpush1.msra.mxu0 0.0
    %717 = vmatprep.subr.mxu0 0.0
    %718 = vmatpush1.msra.mxu0 0.0
    %719 = vmatprep.subr.mxu0 0.0
    %720 = vmatpush1.msra.mxu0 0.0
    %721 = vmatprep.subr.mxu0 0.0
    %722 = vmatpush1.msra.mxu0 0.0
    %723 = vmatprep.subr.mxu0 0.0
    %724 = vmatpush1.msra.mxu0 0.0
    %725 = vmatprep.subr.mxu0 0.0
    %726 = vmatpush1.msra.mxu0 0.0
    %727 = vmatprep.subr.mxu0 0.0
    %728 = vmatpush1.msra.mxu0 0.0
    %729 = vmatprep.subr.mxu0 0.0
    %730 = vmatpush1.msra.mxu0 0.0
    %731 = vmatprep.subr.mxu0 0.0
    %732 = vmatpush1.msra.mxu0 0.0
    %733 = vmatprep.subr.mxu0 0.0
    %734 = vmatpush1.msra.mxu0 0.0
    %735 = vmatprep.subr.mxu0 0.0
    %736 = vmatpush1.msra.mxu0 0.0
    %737 = vmatprep.subr.mxu0 0.0
    %738 = vmatpush1.msra.mxu0 0.0
    %739 = vmatprep.subr.mxu0 0.0
    %740 = vmatpush1.msra.mxu0 0.0
    %741 = vmatprep.subr.mxu0 0.0
    %742 = vmatpush1.msra.mxu0 0.0
    %743 = vmatprep.subr.mxu0 0.0
    %744 = vmatpush1.msra.mxu0 0.0
    %745 = vmatprep.subr.mxu0 0.0
    %746 = vmatpush1.msra.mxu0 0.0
    %747 = vmatprep.subr.mxu0 0.0
    %748 = vmatpush1.msra.mxu0 0.0
    %749 = vmatprep.subr.mxu0 0.0
    %750 = vmatpush1.msra.mxu0 0.0
    %751 = vmatprep.subr.mxu0 0.0
    %752 = vmatpush1.msra.mxu0 0.0
    %753 = vmatprep.subr.mxu0 0.0
    %754 = vmatpush1.msra.mxu0 0.0
    %755 = vmatprep.subr.mxu0 0.0
    %756 = vmatpush1.msra.mxu0 0.0
    %757 = vmatprep.mubr.f32.mxu0 0.0
    %v758 = vand.u32 %v568, 4294901760
    %759 = vmatmul.mubr.f32.gmra.mrb[0].mxu0 %v758
    %v760 = vpop.f32.mrb[0].mxu0
    %v761 = vadd.f32 %v650, %v760
    %v762 = vpop.f32.mrb[0].mxu0
    %763 = vdwg.mxu0
    %764 = vmatprep.subr.mxu0 0.0
    %v765 = vand.u32 %v554, 4294901760
    %v766 = vsub.f32 %v554, %v765
    %767 = vmatpush1.msra.mxu0 %v766
    %768 = vmatprep.subr.mxu0 0.0
    %v769 = vand.u32 %v555, 4294901760
    %v770 = vsub.f32 %v555, %v769
    %771 = vmatpush1.msra.mxu0 %v770
    %772 = vmatprep.subr.mxu0 0.0
    %v773 = vand.u32 %v556, 4294901760
    %v774 = vsub.f32 %v556, %v773
    %775 = vmatpush1.msra.mxu0 %v774
    %776 = vmatprep.subr.mxu0 0.0
    %v777 = vand.u32 %v557, 4294901760
    %v778 = vsub.f32 %v557, %v777
    %779 = vmatpush1.msra.mxu0 %v778
    %780 = vmatprep.subr.mxu0 0.0
    %v781 = vand.u32 %v558, 4294901760
    %v782 = vsub.f32 %v558, %v781
    %783 = vmatpush1.msra.mxu0 %v782
    %784 = vmatprep.subr.mxu0 0.0
    %v785 = vand.u32 %v559, 4294901760
    %v786 = vsub.f32 %v559, %v785
    %787 = vmatpush1.msra.mxu0 %v786
    %788 = vmatprep.subr.mxu0 0.0
    %v789 = vand.u32 %v560, 4294901760
    %v790 = vsub.f32 %v560, %v789
    %791 = vmatpush1.msra.mxu0 %v790
    %792 = vmatprep.subr.mxu0 0.0
    %v793 = vand.u32 %v561, 4294901760
    %v794 = vsub.f32 %v561, %v793
    %795 = vmatpush1.msra.mxu0 %v794
    %796 = vmatprep.subr.mxu0 0.0
    %797 = vmatpush1.msra.mxu0 0.0
    %798 = vmatprep.subr.mxu0 0.0
    %799 = vmatpush1.msra.mxu0 0.0
    %800 = vmatprep.subr.mxu0 0.0
    %801 = vmatpush1.msra.mxu0 0.0
    %802 = vmatprep.subr.mxu0 0.0
    %803 = vmatpush1.msra.mxu0 0.0
    %804 = vmatprep.subr.mxu0 0.0
    %805 = vmatpush1.msra.mxu0 0.0
    %806 = vmatprep.subr.mxu0 0.0
    %807 = vmatpush1.msra.mxu0 0.0
    %808 = vmatprep.subr.mxu0 0.0
    %809 = vmatpush1.msra.mxu0 0.0
    %810 = vmatprep.subr.mxu0 0.0
    %811 = vmatpush1.msra.mxu0 0.0
    %812 = vmatprep.subr.mxu0 0.0
    %813 = vmatpush1.msra.mxu0 0.0
    %814 = vmatprep.subr.mxu0 0.0
    %815 = vmatpush1.msra.mxu0 0.0
    %816 = vmatprep.subr.mxu0 0.0
    %817 = vmatpush1.msra.mxu0 0.0
    %818 = vmatprep.subr.mxu0 0.0
    %819 = vmatpush1.msra.mxu0 0.0
    %820 = vmatprep.subr.mxu0 0.0
    %821 = vmatpush1.msra.mxu0 0.0
    %822 = vmatprep.subr.mxu0 0.0
    %823 = vmatpush1.msra.mxu0 0.0
    %824 = vmatprep.subr.mxu0 0.0
    %825 = vmatpush1.msra.mxu0 0.0
    %826 = vmatprep.subr.mxu0 0.0
    %827 = vmatpush1.msra.mxu0 0.0
    %828 = vmatprep.subr.mxu0 0.0
    %829 = vmatpush1.msra.mxu0 0.0
    %830 = vmatprep.subr.mxu0 0.0
    %831 = vmatpush1.msra.mxu0 0.0
    %832 = vmatprep.subr.mxu0 0.0
    %833 = vmatpush1.msra.mxu0 0.0
    %834 = vmatprep.subr.mxu0 0.0
    %835 = vmatpush1.msra.mxu0 0.0
    %836 = vmatprep.subr.mxu0 0.0
    %837 = vmatpush1.msra.mxu0 0.0
    %838 = vmatprep.subr.mxu0 0.0
    %839 = vmatpush1.msra.mxu0 0.0
    %840 = vmatprep.subr.mxu0 0.0
    %841 = vmatpush1.msra.mxu0 0.0
    %842 = vmatprep.subr.mxu0 0.0
    %843 = vmatpush1.msra.mxu0 0.0
    %844 = vmatprep.mubr.f32.mxu0 0.0
    %v845 = vand.u32 %v568, 4294901760
    %v846 = vsub.f32 %v568, %v845
    %847 = vmatmul.mubr.f32.gmra.mrb[0].mxu0 %v846
    %v848 = vpop.f32.mrb[0].mxu0
    %v849 = vadd.f32 %v761, %v848
    %v850 = vpop.f32.mrb[0].mxu0
    %851 = vdwg.mxu0
    %852 = vmatprep.subr.mxu0 0.0
    %v853 = vand.u32 %v554, 4294901760
    %854 = vmatpush1.msra.mxu0 %v853
    %855 = vmatprep.subr.mxu0 0.0
    %v856 = vand.u32 %v555, 4294901760
    %857 = vmatpush1.msra.mxu0 %v856
    %858 = vmatprep.subr.mxu0 0.0
    %v859 = vand.u32 %v556, 4294901760
    %860 = vmatpush1.msra.mxu0 %v859
    %861 = vmatprep.subr.mxu0 0.0
    %v862 = vand.u32 %v557, 4294901760
    %863 = vmatpush1.msra.mxu0 %v862
    %864 = vmatprep.subr.mxu0 0.0
    %v865 = vand.u32 %v558, 4294901760
    %866 = vmatpush1.msra.mxu0 %v865
    %867 = vmatprep.subr.mxu0 0.0
    %v868 = vand.u32 %v559, 4294901760
    %869 = vmatpush1.msra.mxu0 %v868
    %870 = vmatprep.subr.mxu0 0.0
    %v871 = vand.u32 %v560, 4294901760
    %872 = vmatpush1.msra.mxu0 %v871
    %873 = vmatprep.subr.mxu0 0.0
    %v874 = vand.u32 %v561, 4294901760
    %875 = vmatpush1.msra.mxu0 %v874
    %876 = vmatprep.subr.mxu0 0.0
    %877 = vmatpush1.msra.mxu0 0.0
    %878 = vmatprep.subr.mxu0 0.0
    %879 = vmatpush1.msra.mxu0 0.0
    %880 = vmatprep.subr.mxu0 0.0
    %881 = vmatpush1.msra.mxu0 0.0
    %882 = vmatprep.subr.mxu0 0.0
    %883 = vmatpush1.msra.mxu0 0.0
    %884 = vmatprep.subr.mxu0 0.0
    %885 = vmatpush1.msra.mxu0 0.0
    %886 = vmatprep.subr.mxu0 0.0
    %887 = vmatpush1.msra.mxu0 0.0
    %888 = vmatprep.subr.mxu0 0.0
    %889 = vmatpush1.msra.mxu0 0.0
    %890 = vmatprep.subr.mxu0 0.0
    %891 = vmatpush1.msra.mxu0 0.0
    %892 = vmatprep.subr.mxu0 0.0
    %893 = vmatpush1.msra.mxu0 0.0
    %894 = vmatprep.subr.mxu0 0.0
    %895 = vmatpush1.msra.mxu0 0.0
    %896 = vmatprep.subr.mxu0 0.0
    %897 = vmatpush1.msra.mxu0 0.0
    %898 = vmatprep.subr.mxu0 0.0
    %899 = vmatpush1.msra.mxu0 0.0
    %900 = vmatprep.subr.mxu0 0.0
    %901 = vmatpush1.msra.mxu0 0.0
    %902 = vmatprep.subr.mxu0 0.0
    %903 = vmatpush1.msra.mxu0 0.0
    %904 = vmatprep.subr.mxu0 0.0
    %905 = vmatpush1.msra.mxu0 0.0
    %906 = vmatprep.subr.mxu0 0.0
    %907 = vmatpush1.msra.mxu0 0.0
    %908 = vmatprep.subr.mxu0 0.0
    %909 = vmatpush1.msra.mxu0 0.0
    %910 = vmatprep.subr.mxu0 0.0
    %911 = vmatpush1.msra.mxu0 0.0
    %912 = vmatprep.subr.mxu0 0.0
    %913 = vmatpush1.msra.mxu0 0.0
    %914 = vmatprep.subr.mxu0 0.0
    %915 = vmatpush1.msra.mxu0 0.0
    %916 = vmatprep.subr.mxu0 0.0
    %917 = vmatpush1.msra.mxu0 0.0
    %918 = vmatprep.subr.mxu0 0.0
    %919 = vmatpush1.msra.mxu0 0.0
    %920 = vmatprep.subr.mxu0 0.0
    %921 = vmatpush1.msra.mxu0 0.0
    %922 = vmatprep.subr.mxu0 0.0
    %923 = vmatpush1.msra.mxu0 0.0
    %924 = vmatprep.mubr.f32.mxu0 0.0
    %v925 = vand.u32 %v568, 4294901760
    %v926 = vsub.f32 %v568, %v925
    %v927 = vand.u32 %v926, 4294901760
    %928 = vmatmul.mubr.f32.gmra.mrb[0].mxu0 %v927
    %v929 = vpop.f32.mrb[0].mxu0
    %v930 = vadd.f32 %v849, %v929
    %v931 = vpop.f32.mrb[0].mxu0
    %932 = vdwg.mxu0
    %933 = vmatprep.subr.mxu0 0.0
    %v934 = vand.u32 %v554, 4294901760
    %v935 = vsub.f32 %v554, %v934
    %v936 = vand.u32 %v935, 4294901760
    %937 = vmatpush1.msra.mxu0 %v936
    %938 = vmatprep.subr.mxu0 0.0
    %v939 = vand.u32 %v555, 4294901760
    %v940 = vsub.f32 %v555, %v939
    %v941 = vand.u32 %v940, 4294901760
    %942 = vmatpush1.msra.mxu0 %v941
    %943 = vmatprep.subr.mxu0 0.0
    %v944 = vand.u32 %v556, 4294901760
    %v945 = vsub.f32 %v556, %v944
    %v946 = vand.u32 %v945, 4294901760
    %947 = vmatpush1.msra.mxu0 %v946
    %948 = vmatprep.subr.mxu0 0.0
    %v949 = vand.u32 %v557, 4294901760
    %v950 = vsub.f32 %v557, %v949
    %v951 = vand.u32 %v950, 4294901760
    %952 = vmatpush1.msra.mxu0 %v951
    %953 = vmatprep.subr.mxu0 0.0
    %v954 = vand.u32 %v558, 4294901760
    %v955 = vsub.f32 %v558, %v954
    %v956 = vand.u32 %v955, 4294901760
    %957 = vmatpush1.msra.mxu0 %v956
    %958 = vmatprep.subr.mxu0 0.0
    %v959 = vand.u32 %v559, 4294901760
    %v960 = vsub.f32 %v559, %v959
    %v961 = vand.u32 %v960, 4294901760
    %962 = vmatpush1.msra.mxu0 %v961
    %963 = vmatprep.subr.mxu0 0.0
    %v964 = vand.u32 %v560, 4294901760
    %v965 = vsub.f32 %v560, %v964
    %v966 = vand.u32 %v965, 4294901760
    %967 = vmatpush1.msra.mxu0 %v966
    %968 = vmatprep.subr.mxu0 0.0
    %v969 = vand.u32 %v561, 4294901760
    %v970 = vsub.f32 %v561, %v969
    %v971 = vand.u32 %v970, 4294901760
    %972 = vmatpush1.msra.mxu0 %v971
    %973 = vmatprep.subr.mxu0 0.0
    %974 = vmatpush1.msra.mxu0 0.0
    %975 = vmatprep.subr.mxu0 0.0
    %976 = vmatpush1.msra.mxu0 0.0
    %977 = vmatprep.subr.mxu0 0.0
    %978 = vmatpush1.msra.mxu0 0.0
    %979 = vmatprep.subr.mxu0 0.0
    %980 = vmatpush1.msra.mxu0 0.0
    %981 = vmatprep.subr.mxu0 0.0
    %982 = vmatpush1.msra.mxu0 0.0
    %983 = vmatprep.subr.mxu0 0.0
    %984 = vmatpush1.msra.mxu0 0.0
    %985 = vmatprep.subr.mxu0 0.0
    %986 = vmatpush1.msra.mxu0 0.0
    %987 = vmatprep.subr.mxu0 0.0
    %988 = vmatpush1.msra.mxu0 0.0
    %989 = vmatprep.subr.mxu0 0.0
    %990 = vmatpush1.msra.mxu0 0.0
    %991 = vmatprep.subr.mxu0 0.0
    %992 = vmatpush1.msra.mxu0 0.0
    %993 = vmatprep.subr.mxu0 0.0
    %994 = vmatpush1.msra.mxu0 0.0
    %995 = vmatprep.subr.mxu0 0.0
    %996 = vmatpush1.msra.mxu0 0.0
    %997 = vmatprep.subr.mxu0 0.0
    %998 = vmatpush1.msra.mxu0 0.0
    %999 = vmatprep.subr.mxu0 0.0
    %1000 = vmatpush1.msra.mxu0 0.0
    %1001 = vmatprep.subr.mxu0 0.0
    %1002 = vmatpush1.msra.mxu0 0.0
    %1003 = vmatprep.subr.mxu0 0.0
    %1004 = vmatpush1.msra.mxu0 0.0
    %1005 = vmatprep.subr.mxu0 0.0
    %1006 = vmatpush1.msra.mxu0 0.0
    %1007 = vmatprep.subr.mxu0 0.0
    %1008 = vmatpush1.msra.mxu0 0.0
    %1009 = vmatprep.subr.mxu0 0.0
    %1010 = vmatpush1.msra.mxu0 0.0
    %1011 = vmatprep.subr.mxu0 0.0
    %1012 = vmatpush1.msra.mxu0 0.0
    %1013 = vmatprep.subr.mxu0 0.0
    %1014 = vmatpush1.msra.mxu0 0.0
    %1015 = vmatprep.subr.mxu0 0.0
    %1016 = vmatpush1.msra.mxu0 0.0
    %1017 = vmatprep.subr.mxu0 0.0
    %1018 = vmatpush1.msra.mxu0 0.0
    %1019 = vmatprep.subr.mxu0 0.0
    %1020 = vmatpush1.msra.mxu0 0.0
    %1021 = vmatprep.mubr.f32.mxu0 0.0
    %v1022 = vand.u32 %v568, 4294901760
    %1023 = vmatmul.mubr.f32.gmra.mrb[0].mxu0 %v1022
    %v1024 = vpop.f32.mrb[0].mxu0
    %v1025 = vadd.f32 %v930, %v1024
    %v1026 = vpop.f32.mrb[0].mxu0
    %1027 = vdwg.mxu0
    %1028 = vmatprep.subr.mxu0 0.0
    %v1029 = vand.u32 %v554, 4294901760
    %1030 = vmatpush1.msra.mxu0 %v1029
    %1031 = vmatprep.subr.mxu0 0.0
    %v1032 = vand.u32 %v555, 4294901760
    %1033 = vmatpush1.msra.mxu0 %v1032
    %1034 = vmatprep.subr.mxu0 0.0
    %v1035 = vand.u32 %v556, 4294901760
    %1036 = vmatpush1.msra.mxu0 %v1035
    %1037 = vmatprep.subr.mxu0 0.0
    %v1038 = vand.u32 %v557, 4294901760
    %1039 = vmatpush1.msra.mxu0 %v1038
    %1040 = vmatprep.subr.mxu0 0.0
    %v1041 = vand.u32 %v558, 4294901760
    %1042 = vmatpush1.msra.mxu0 %v1041
    %1043 = vmatprep.subr.mxu0 0.0
    %v1044 = vand.u32 %v559, 4294901760
    %1045 = vmatpush1.msra.mxu0 %v1044
    %1046 = vmatprep.subr.mxu0 0.0
    %v1047 = vand.u32 %v560, 4294901760
    %1048 = vmatpush1.msra.mxu0 %v1047
    %1049 = vmatprep.subr.mxu0 0.0
    %v1050 = vand.u32 %v561, 4294901760
    %1051 = vmatpush1.msra.mxu0 %v1050
    %1052 = vmatprep.subr.mxu0 0.0
    %1053 = vmatpush1.msra.mxu0 0.0
    %1054 = vmatprep.subr.mxu0 0.0
    %1055 = vmatpush1.msra.mxu0 0.0
    %1056 = vmatprep.subr.mxu0 0.0
    %1057 = vmatpush1.msra.mxu0 0.0
    %1058 = vmatprep.subr.mxu0 0.0
    %1059 = vmatpush1.msra.mxu0 0.0
    %1060 = vmatprep.subr.mxu0 0.0
    %1061 = vmatpush1.msra.mxu0 0.0
    %1062 = vmatprep.subr.mxu0 0.0
    %1063 = vmatpush1.msra.mxu0 0.0
    %1064 = vmatprep.subr.mxu0 0.0
    %1065 = vmatpush1.msra.mxu0 0.0
    %1066 = vmatprep.subr.mxu0 0.0
    %1067 = vmatpush1.msra.mxu0 0.0
    %1068 = vmatprep.subr.mxu0 0.0
    %1069 = vmatpush1.msra.mxu0 0.0
    %1070 = vmatprep.subr.mxu0 0.0
    %1071 = vmatpush1.msra.mxu0 0.0
    %1072 = vmatprep.subr.mxu0 0.0
    %1073 = vmatpush1.msra.mxu0 0.0
    %1074 = vmatprep.subr.mxu0 0.0
    %1075 = vmatpush1.msra.mxu0 0.0
    %1076 = vmatprep.subr.mxu0 0.0
    %1077 = vmatpush1.msra.mxu0 0.0
    %1078 = vmatprep.subr.mxu0 0.0
    %1079 = vmatpush1.msra.mxu0 0.0
    %1080 = vmatprep.subr.mxu0 0.0
    %1081 = vmatpush1.msra.mxu0 0.0
    %1082 = vmatprep.subr.mxu0 0.0
    %1083 = vmatpush1.msra.mxu0 0.0
    %1084 = vmatprep.subr.mxu0 0.0
    %1085 = vmatpush1.msra.mxu0 0.0
    %1086 = vmatprep.subr.mxu0 0.0
    %1087 = vmatpush1.msra.mxu0 0.0
    %1088 = vmatprep.subr.mxu0 0.0
    %1089 = vmatpush1.msra.mxu0 0.0
    %1090 = vmatprep.subr.mxu0 0.0
    %1091 = vmatpush1.msra.mxu0 0.0
    %1092 = vmatprep.subr.mxu0 0.0
    %1093 = vmatpush1.msra.mxu0 0.0
    %1094 = vmatprep.subr.mxu0 0.0
    %1095 = vmatpush1.msra.mxu0 0.0
    %1096 = vmatprep.subr.mxu0 0.0
    %1097 = vmatpush1.msra.mxu0 0.0
    %1098 = vmatprep.subr.mxu0 0.0
    %1099 = vmatpush1.msra.mxu0 0.0
    %1100 = vmatprep.mubr.f32.mxu0 0.0
    %v1101 = vand.u32 %v568, 4294901760
    %1102 = vmatmul.mubr.f32.gmra.mrb[0].mxu0 %v1101
    %v1103 = vpop.f32.mrb[0].mxu0
    %v1104 = vadd.f32 %v1025, %v1103
    %v1105 = vpop.f32.mrb[0].mxu0
    %1106 = vdwg.mxu0
    %v1107 = vld [vmem:[%s4 + $0x1] sm:$0x1]
    %v1108 = vld [vmem:[%s4 + $0x2] sm:$0x1]
    %v1109 = vsel %vm37, %v1104, 0.0
    %1110 = vadd.xlane.f32.xlu0 %v1109
    %v1111 = vpop.xlane.xlu0 %1110
    %v1112 = vrcp.pop 32.0
    %v1113 = vmul.f32 %v1111, %v1112
    %v1114 = vsub.f32 %v1104, %v1113
    %v1115 = vmul.f32 %v1114, %v1114
    %v1116 = vsel %vm37, %v1115, 0.0
    %1117 = vadd.xlane.f32.xlu0 %v1116
    %v1118 = vpop.xlane.xlu0 %1117
    %v1119 = vmul.f32 %v1118, %v1112
    %v1120 = vadd.f32 %v1119, 1e-05
    %v1121 = vrsqrt.pop %v1120
    %v1122 = vmul.f32 %v1114, %v1121
    %v1123 = vlaneseq
    %v1124 = vshrl.u32 %v1123, 7
    %v1125 = vsub.s32 0, %v1124
    %v1126 = vrot.slane %v1107, %v1125
    %v1127 = vmul.f32 %v1122, %v1126
    %v1128 = vlaneseq
    %v1129 = vshrl.u32 %v1128, 7
    %v1130 = vsub.s32 0, %v1129
    %v1131 = vrot.slane %v1108, %v1130
    %v1132 = vadd.f32 %v1127, %v1131
    %v1133 = vmax.f32 %v1132, 0.0
    %v1134 = vld [vmem:[%s5] sm:$0xff]
    %v1135 = vld [vmem:[%s5 + $0x8] sm:$0xff]
    %v1136 = vld [vmem:[%s5 + $0x10] sm:$0xff]
    %v1137 = vld [vmem:[%s5 + $0x18] sm:$0xff]
    %v1138 = vld [vmem:[%s6] sm:$0x1]
    %v1140 = vlaneseq
    %v1141 = vshrl.u32 %v1140, 7
    %v1142 = vsub.s32 0, %v1141
    %v1143 = vrot.slane %v1138, %v1142
    %v1146 = vsel %vm37, %v1133, 0
    %1148 = vmatprep.subr.mxu0 0.0
    %v1149 = vand.u32 %v1134, 4294901760
    %1150 = vmatpush1.msra.mxu0 %v1149
    %1151 = vmatprep.subr.mxu0 0.0
    %v1152 = vand.u32 %v1135, 4294901760
    %1153 = vmatpush1.msra.mxu0 %v1152
    %1154 = vmatprep.subr.mxu0 0.0
    %v1155 = vand.u32 %v1136, 4294901760
    %1156 = vmatpush1.msra.mxu0 %v1155
    %1157 = vmatprep.subr.mxu0 0.0
    %v1158 = vand.u32 %v1137, 4294901760
    %1159 = vmatpush1.msra.mxu0 %v1158
    %1160 = vmatprep.subr.mxu0 0.0
    %1161 = vmatpush1.msra.mxu0 0.0
    %1162 = vmatprep.subr.mxu0 0.0
    %1163 = vmatpush1.msra.mxu0 0.0
    %1164 = vmatprep.subr.mxu0 0.0
    %1165 = vmatpush1.msra.mxu0 0.0
    %1166 = vmatprep.subr.mxu0 0.0
    %1167 = vmatpush1.msra.mxu0 0.0
    %1168 = vmatprep.subr.mxu0 0.0
    %1169 = vmatpush1.msra.mxu0 0.0
    %1170 = vmatprep.subr.mxu0 0.0
    %1171 = vmatpush1.msra.mxu0 0.0
    %1172 = vmatprep.subr.mxu0 0.0
    %1173 = vmatpush1.msra.mxu0 0.0
    %1174 = vmatprep.subr.mxu0 0.0
    %1175 = vmatpush1.msra.mxu0 0.0
    %1176 = vmatprep.subr.mxu0 0.0
    %1177 = vmatpush1.msra.mxu0 0.0
    %1178 = vmatprep.subr.mxu0 0.0
    %1179 = vmatpush1.msra.mxu0 0.0
    %1180 = vmatprep.subr.mxu0 0.0
    %1181 = vmatpush1.msra.mxu0 0.0
    %1182 = vmatprep.subr.mxu0 0.0
    %1183 = vmatpush1.msra.mxu0 0.0
    %1184 = vmatprep.subr.mxu0 0.0
    %1185 = vmatpush1.msra.mxu0 0.0
    %1186 = vmatprep.subr.mxu0 0.0
    %1187 = vmatpush1.msra.mxu0 0.0
    %1188 = vmatprep.subr.mxu0 0.0
    %1189 = vmatpush1.msra.mxu0 0.0
    %1190 = vmatprep.subr.mxu0 0.0
    %1191 = vmatpush1.msra.mxu0 0.0
    %1192 = vmatprep.subr.mxu0 0.0
    %1193 = vmatpush1.msra.mxu0 0.0
    %1194 = vmatprep.subr.mxu0 0.0
    %1195 = vmatpush1.msra.mxu0 0.0
    %1196 = vmatprep.subr.mxu0 0.0
    %1197 = vmatpush1.msra.mxu0 0.0
    %1198 = vmatprep.subr.mxu0 0.0
    %1199 = vmatpush1.msra.mxu0 0.0
    %1200 = vmatprep.subr.mxu0 0.0
    %1201 = vmatpush1.msra.mxu0 0.0
    %1202 = vmatprep.subr.mxu0 0.0
    %1203 = vmatpush1.msra.mxu0 0.0
    %1204 = vmatprep.subr.mxu0 0.0
    %1205 = vmatpush1.msra.mxu0 0.0
    %1206 = vmatprep.subr.mxu0 0.0
    %1207 = vmatpush1.msra.mxu0 0.0
    %1208 = vmatprep.subr.mxu0 0.0
    %1209 = vmatpush1.msra.mxu0 0.0
    %1210 = vmatprep.subr.mxu0 0.0
    %1211 = vmatpush1.msra.mxu0 0.0
    %1212 = vmatprep.subr.mxu0 0.0
    %1213 = vmatpush1.msra.mxu0 0.0
    %1214 = vmatprep.subr.mxu0 0.0
    %1215 = vmatpush1.msra.mxu0 0.0
    %1216 = vmatprep.mubr.f32.mxu0 0.0
    %v1217 = vand.u32 %v1146, 4294901760
    %v1218 = vsub.f32 %v1146, %v1217
    %v1219 = vand.u32 %v1218, 4294901760
    %v1220 = vsub.f32 %v1218, %v1219
    %v1221 = vand.u32 %v1220, 4294901760
    %1222 = vmatmul.mubr.f32.gmra.mrb[0].mxu0 %v1221
    %v1223 = vpop.f32.mrb[0].mxu0
    %v1224 = vadd.f32 %v1143, %v1223
    %v1225 = vpop.f32.mrb[0].mxu0
    %1226 = vdwg.mxu0
    %1227 = vmatprep.subr.mxu0 0.0
    %v1228 = vand.u32 %v1134, 4294901760
    %v1229 = vsub.f32 %v1134, %v1228
    %v1230 = vand.u32 %v1229, 4294901760
    %v1231 = vsub.f32 %v1229, %v1230
    %v1232 = vand.u32 %v1231, 4294901760
    %1233 = vmatpush1.msra.mxu0 %v1232
    %1234 = vmatprep.subr.mxu0 0.0
    %v1235 = vand.u32 %v1135, 4294901760
    %v1236 = vsub.f32 %v1135, %v1235
    %v1237 = vand.u32 %v1236, 4294901760
    %v1238 = vsub.f32 %v1236, %v1237
    %v1239 = vand.u32 %v1238, 4294901760
    %1240 = vmatpush1.msra.mxu0 %v1239
    %1241 = vmatprep.subr.mxu0 0.0
    %v1242 = vand.u32 %v1136, 4294901760
    %v1243 = vsub.f32 %v1136, %v1242
    %v1244 = vand.u32 %v1243, 4294901760
    %v1245 = vsub.f32 %v1243, %v1244
    %v1246 = vand.u32 %v1245, 4294901760
    %1247 = vmatpush1.msra.mxu0 %v1246
    %1248 = vmatprep.subr.mxu0 0.0
    %v1249 = vand.u32 %v1137, 4294901760
    %v1250 = vsub.f32 %v1137, %v1249
    %v1251 = vand.u32 %v1250, 4294901760
    %v1252 = vsub.f32 %v1250, %v1251
    %v1253 = vand.u32 %v1252, 4294901760
    %1254 = vmatpush1.msra.mxu0 %v1253
    %1255 = vmatprep.subr.mxu0 0.0
    %1256 = vmatpush1.msra.mxu0 0.0
    %1257 = vmatprep.subr.mxu0 0.0
    %1258 = vmatpush1.msra.mxu0 0.0
    %1259 = vmatprep.subr.mxu0 0.0
    %1260 = vmatpush1.msra.mxu0 0.0
    %1261 = vmatprep.subr.mxu0 0.0
    %1262 = vmatpush1.msra.mxu0 0.0
    %1263 = vmatprep.subr.mxu0 0.0
    %1264 = vmatpush1.msra.mxu0 0.0
    %1265 = vmatprep.subr.mxu0 0.0
    %1266 = vmatpush1.msra.mxu0 0.0
    %1267 = vmatprep.subr.mxu0 0.0
    %1268 = vmatpush1.msra.mxu0 0.0
    %1269 = vmatprep.subr.mxu0 0.0
    %1270 = vmatpush1.msra.mxu0 0.0
    %1271 = vmatprep.subr.mxu0 0.0
    %1272 = vmatpush1.msra.mxu0 0.0
    %1273 = vmatprep.subr.mxu0 0.0
    %1274 = vmatpush1.msra.mxu0 0.0
    %1275 = vmatprep.subr.mxu0 0.0
    %1276 = vmatpush1.msra.mxu0 0.0
    %1277 = vmatprep.subr.mxu0 0.0
    %1278 = vmatpush1.msra.mxu0 0.0
    %1279 = vmatprep.subr.mxu0 0.0
    %1280 = vmatpush1.msra.mxu0 0.0
    %1281 = vmatprep.subr.mxu0 0.0
    %1282 = vmatpush1.msra.mxu0 0.0
    %1283 = vmatprep.subr.mxu0 0.0
    %1284 = vmatpush1.msra.mxu0 0.0
    %1285 = vmatprep.subr.mxu0 0.0
    %1286 = vmatpush1.msra.mxu0 0.0
    %1287 = vmatprep.subr.mxu0 0.0
    %1288 = vmatpush1.msra.mxu0 0.0
    %1289 = vmatprep.subr.mxu0 0.0
    %1290 = vmatpush1.msra.mxu0 0.0
    %1291 = vmatprep.subr.mxu0 0.0
    %1292 = vmatpush1.msra.mxu0 0.0
    %1293 = vmatprep.subr.mxu0 0.0
    %1294 = vmatpush1.msra.mxu0 0.0
    %1295 = vmatprep.subr.mxu0 0.0
    %1296 = vmatpush1.msra.mxu0 0.0
    %1297 = vmatprep.subr.mxu0 0.0
    %1298 = vmatpush1.msra.mxu0 0.0
    %1299 = vmatprep.subr.mxu0 0.0
    %1300 = vmatpush1.msra.mxu0 0.0
    %1301 = vmatprep.subr.mxu0 0.0
    %1302 = vmatpush1.msra.mxu0 0.0
    %1303 = vmatprep.subr.mxu0 0.0
    %1304 = vmatpush1.msra.mxu0 0.0
    %1305 = vmatprep.subr.mxu0 0.0
    %1306 = vmatpush1.msra.mxu0 0.0
    %1307 = vmatprep.subr.mxu0 0.0
    %1308 = vmatpush1.msra.mxu0 0.0
    %1309 = vmatprep.subr.mxu0 0.0
    %1310 = vmatpush1.msra.mxu0 0.0
    %1311 = vmatprep.mubr.f32.mxu0 0.0
    %v1312 = vand.u32 %v1146, 4294901760
    %1313 = vmatmul.mubr.f32.gmra.mrb[0].mxu0 %v1312
    %v1314 = vpop.f32.mrb[0].mxu0
    %v1315 = vadd.f32 %v1224, %v1314
    %v1316 = vpop.f32.mrb[0].mxu0
    %1317 = vdwg.mxu0
    %1318 = vmatprep.subr.mxu0 0.0
    %v1319 = vand.u32 %v1134, 4294901760
    %v1320 = vsub.f32 %v1134, %v1319
    %1321 = vmatpush1.msra.mxu0 %v1320
    %1322 = vmatprep.subr.mxu0 0.0
    %v1323 = vand.u32 %v1135, 4294901760
    %v1324 = vsub.f32 %v1135, %v1323
    %1325 = vmatpush1.msra.mxu0 %v1324
    %1326 = vmatprep.subr.mxu0 0.0
    %v1327 = vand.u32 %v1136, 4294901760
    %v1328 = vsub.f32 %v1136, %v1327
    %1329 = vmatpush1.msra.mxu0 %v1328
    %1330 = vmatprep.subr.mxu0 0.0
    %v1331 = vand.u32 %v1137, 4294901760
    %v1332 = vsub.f32 %v1137, %v1331
    %1333 = vmatpush1.msra.mxu0 %v1332
    %1334 = vmatprep.subr.mxu0 0.0
    %1335 = vmatpush1.msra.mxu0 0.0
    %1336 = vmatprep.subr.mxu0 0.0
    %1337 = vmatpush1.msra.mxu0 0.0
    %1338 = vmatprep.subr.mxu0 0.0
    %1339 = vmatpush1.msra.mxu0 0.0
    %1340 = vmatprep.subr.mxu0 0.0
    %1341 = vmatpush1.msra.mxu0 0.0
    %1342 = vmatprep.subr.mxu0 0.0
    %1343 = vmatpush1.msra.mxu0 0.0
    %1344 = vmatprep.subr.mxu0 0.0
    %1345 = vmatpush1.msra.mxu0 0.0
    %1346 = vmatprep.subr.mxu0 0.0
    %1347 = vmatpush1.msra.mxu0 0.0
    %1348 = vmatprep.subr.mxu0 0.0
    %1349 = vmatpush1.msra.mxu0 0.0
    %1350 = vmatprep.subr.mxu0 0.0
    %1351 = vmatpush1.msra.mxu0 0.0
    %1352 = vmatprep.subr.mxu0 0.0
    %1353 = vmatpush1.msra.mxu0 0.0
    %1354 = vmatprep.subr.mxu0 0.0
    %1355 = vmatpush1.msra.mxu0 0.0
    %1356 = vmatprep.subr.mxu0 0.0
    %1357 = vmatpush1.msra.mxu0 0.0
    %1358 = vmatprep.subr.mxu0 0.0
    %1359 = vmatpush1.msra.mxu0 0.0
    %1360 = vmatprep.subr.mxu0 0.0
    %1361 = vmatpush1.msra.mxu0 0.0
    %1362 = vmatprep.subr.mxu0 0.0
    %1363 = vmatpush1.msra.mxu0 0.0
    %1364 = vmatprep.subr.mxu0 0.0
    %1365 = vmatpush1.msra.mxu0 0.0
    %1366 = vmatprep.subr.mxu0 0.0
    %1367 = vmatpush1.msra.mxu0 0.0
    %1368 = vmatprep.subr.mxu0 0.0
    %1369 = vmatpush1.msra.mxu0 0.0
    %1370 = vmatprep.subr.mxu0 0.0
    %1371 = vmatpush1.msra.mxu0 0.0
    %1372 = vmatprep.subr.mxu0 0.0
    %1373 = vmatpush1.msra.mxu0 0.0
    %1374 = vmatprep.subr.mxu0 0.0
    %1375 = vmatpush1.msra.mxu0 0.0
    %1376 = vmatprep.subr.mxu0 0.0
    %1377 = vmatpush1.msra.mxu0 0.0
    %1378 = vmatprep.subr.mxu0 0.0
    %1379 = vmatpush1.msra.mxu0 0.0
    %1380 = vmatprep.subr.mxu0 0.0
    %1381 = vmatpush1.msra.mxu0 0.0
    %1382 = vmatprep.subr.mxu0 0.0
    %1383 = vmatpush1.msra.mxu0 0.0
    %1384 = vmatprep.subr.mxu0 0.0
    %1385 = vmatpush1.msra.mxu0 0.0
    %1386 = vmatprep.subr.mxu0 0.0
    %1387 = vmatpush1.msra.mxu0 0.0
    %1388 = vmatprep.subr.mxu0 0.0
    %1389 = vmatpush1.msra.mxu0 0.0
    %1390 = vmatprep.mubr.f32.mxu0 0.0
    %v1391 = vand.u32 %v1146, 4294901760
    %v1392 = vsub.f32 %v1146, %v1391
    %1393 = vmatmul.mubr.f32.gmra.mrb[0].mxu0 %v1392
    %v1394 = vpop.f32.mrb[0].mxu0
    %v1395 = vadd.f32 %v1315, %v1394
    %v1396 = vpop.f32.mrb[0].mxu0
    %1397 = vdwg.mxu0
    %1398 = vmatprep.subr.mxu0 0.0
    %v1399 = vand.u32 %v1134, 4294901760
    %1400 = vmatpush1.msra.mxu0 %v1399
    %1401 = vmatprep.subr.mxu0 0.0
    %v1402 = vand.u32 %v1135, 4294901760
    %1403 = vmatpush1.msra.mxu0 %v1402
    %1404 = vmatprep.subr.mxu0 0.0
    %v1405 = vand.u32 %v1136, 4294901760
    %1406 = vmatpush1.msra.mxu0 %v1405
    %1407 = vmatprep.subr.mxu0 0.0
    %v1408 = vand.u32 %v1137, 4294901760
    %1409 = vmatpush1.msra.mxu0 %v1408
    %1410 = vmatprep.subr.mxu0 0.0
    %1411 = vmatpush1.msra.mxu0 0.0
    %1412 = vmatprep.subr.mxu0 0.0
    %1413 = vmatpush1.msra.mxu0 0.0
    %1414 = vmatprep.subr.mxu0 0.0
    %1415 = vmatpush1.msra.mxu0 0.0
    %1416 = vmatprep.subr.mxu0 0.0
    %1417 = vmatpush1.msra.mxu0 0.0
    %1418 = vmatprep.subr.mxu0 0.0
    %1419 = vmatpush1.msra.mxu0 0.0
    %1420 = vmatprep.subr.mxu0 0.0
    %1421 = vmatpush1.msra.mxu0 0.0
    %1422 = vmatprep.subr.mxu0 0.0
    %1423 = vmatpush1.msra.mxu0 0.0
    %1424 = vmatprep.subr.mxu0 0.0
    %1425 = vmatpush1.msra.mxu0 0.0
    %1426 = vmatprep.subr.mxu0 0.0
    %1427 = vmatpush1.msra.mxu0 0.0
    %1428 = vmatprep.subr.mxu0 0.0
    %1429 = vmatpush1.msra.mxu0 0.0
    %1430 = vmatprep.subr.mxu0 0.0
    %1431 = vmatpush1.msra.mxu0 0.0
    %1432 = vmatprep.subr.mxu0 0.0
    %1433 = vmatpush1.msra.mxu0 0.0
    %1434 = vmatprep.subr.mxu0 0.0
    %1435 = vmatpush1.msra.mxu0 0.0
    %1436 = vmatprep.subr.mxu0 0.0
    %1437 = vmatpush1.msra.mxu0 0.0
    %1438 = vmatprep.subr.mxu0 0.0
    %1439 = vmatpush1.msra.mxu0 0.0
    %1440 = vmatprep.subr.mxu0 0.0
    %1441 = vmatpush1.msra.mxu0 0.0
    %1442 = vmatprep.subr.mxu0 0.0
    %1443 = vmatpush1.msra.mxu0 0.0
    %1444 = vmatprep.subr.mxu0 0.0
    %1445 = vmatpush1.msra.mxu0 0.0
    %1446 = vmatprep.subr.mxu0 0.0
    %1447 = vmatpush1.msra.mxu0 0.0
    %1448 = vmatprep.subr.mxu0 0.0
    %1449 = vmatpush1.msra.mxu0 0.0
    %1450 = vmatprep.subr.mxu0 0.0
    %1451 = vmatpush1.msra.mxu0 0.0
    %1452 = vmatprep.subr.mxu0 0.0
    %1453 = vmatpush1.msra.mxu0 0.0
    %1454 = vmatprep.subr.mxu0 0.0
    %1455 = vmatpush1.msra.mxu0 0.0
    %1456 = vmatprep.subr.mxu0 0.0
    %1457 = vmatpush1.msra.mxu0 0.0
    %1458 = vmatprep.subr.mxu0 0.0
    %1459 = vmatpush1.msra.mxu0 0.0
    %1460 = vmatprep.subr.mxu0 0.0
    %1461 = vmatpush1.msra.mxu0 0.0
    %1462 = vmatprep.subr.mxu0 0.0
    %1463 = vmatpush1.msra.mxu0 0.0
    %1464 = vmatprep.subr.mxu0 0.0
    %1465 = vmatpush1.msra.mxu0 0.0
    %1466 = vmatprep.mubr.f32.mxu0 0.0
    %v1467 = vand.u32 %v1146, 4294901760
    %v1468 = vsub.f32 %v1146, %v1467
    %v1469 = vand.u32 %v1468, 4294901760
    %1470 = vmatmul.mubr.f32.gmra.mrb[0].mxu0 %v1469
    %v1471 = vpop.f32.mrb[0].mxu0
    %v1472 = vadd.f32 %v1395, %v1471
    %v1473 = vpop.f32.mrb[0].mxu0
    %1474 = vdwg.mxu0
    %1475 = vmatprep.subr.mxu0 0.0
    %v1476 = vand.u32 %v1134, 4294901760
    %v1477 = vsub.f32 %v1134, %v1476
    %v1478 = vand.u32 %v1477, 4294901760
    %1479 = vmatpush1.msra.mxu0 %v1478
    %1480 = vmatprep.subr.mxu0 0.0
    %v1481 = vand.u32 %v1135, 4294901760
    %v1482 = vsub.f32 %v1135, %v1481
    %v1483 = vand.u32 %v1482, 4294901760
    %1484 = vmatpush1.msra.mxu0 %v1483
    %1485 = vmatprep.subr.mxu0 0.0
    %v1486 = vand.u32 %v1136, 4294901760
    %v1487 = vsub.f32 %v1136, %v1486
    %v1488 = vand.u32 %v1487, 4294901760
    %1489 = vmatpush1.msra.mxu0 %v1488
    %1490 = vmatprep.subr.mxu0 0.0
    %v1491 = vand.u32 %v1137, 4294901760
    %v1492 = vsub.f32 %v1137, %v1491
    %v1493 = vand.u32 %v1492, 4294901760
    %1494 = vmatpush1.msra.mxu0 %v1493
    %1495 = vmatprep.subr.mxu0 0.0
    %1496 = vmatpush1.msra.mxu0 0.0
    %1497 = vmatprep.subr.mxu0 0.0
    %1498 = vmatpush1.msra.mxu0 0.0
    %1499 = vmatprep.subr.mxu0 0.0
    %1500 = vmatpush1.msra.mxu0 0.0
    %1501 = vmatprep.subr.mxu0 0.0
    %1502 = vmatpush1.msra.mxu0 0.0
    %1503 = vmatprep.subr.mxu0 0.0
    %1504 = vmatpush1.msra.mxu0 0.0
    %1505 = vmatprep.subr.mxu0 0.0
    %1506 = vmatpush1.msra.mxu0 0.0
    %1507 = vmatprep.subr.mxu0 0.0
    %1508 = vmatpush1.msra.mxu0 0.0
    %1509 = vmatprep.subr.mxu0 0.0
    %1510 = vmatpush1.msra.mxu0 0.0
    %1511 = vmatprep.subr.mxu0 0.0
    %1512 = vmatpush1.msra.mxu0 0.0
    %1513 = vmatprep.subr.mxu0 0.0
    %1514 = vmatpush1.msra.mxu0 0.0
    %1515 = vmatprep.subr.mxu0 0.0
    %1516 = vmatpush1.msra.mxu0 0.0
    %1517 = vmatprep.subr.mxu0 0.0
    %1518 = vmatpush1.msra.mxu0 0.0
    %1519 = vmatprep.subr.mxu0 0.0
    %1520 = vmatpush1.msra.mxu0 0.0
    %1521 = vmatprep.subr.mxu0 0.0
    %1522 = vmatpush1.msra.mxu0 0.0
    %1523 = vmatprep.subr.mxu0 0.0
    %1524 = vmatpush1.msra.mxu0 0.0
    %1525 = vmatprep.subr.mxu0 0.0
    %1526 = vmatpush1.msra.mxu0 0.0
    %1527 = vmatprep.subr.mxu0 0.0
    %1528 = vmatpush1.msra.mxu0 0.0
    %1529 = vmatprep.subr.mxu0 0.0
    %1530 = vmatpush1.msra.mxu0 0.0
    %1531 = vmatprep.subr.mxu0 0.0
    %1532 = vmatpush1.msra.mxu0 0.0
    %1533 = vmatprep.subr.mxu0 0.0
    %1534 = vmatpush1.msra.mxu0 0.0
    %1535 = vmatprep.subr.mxu0 0.0
    %1536 = vmatpush1.msra.mxu0 0.0
    %1537 = vmatprep.subr.mxu0 0.0
    %1538 = vmatpush1.msra.mxu0 0.0
    %1539 = vmatprep.subr.mxu0 0.0
    %1540 = vmatpush1.msra.mxu0 0.0
    %1541 = vmatprep.subr.mxu0 0.0
    %1542 = vmatpush1.msra.mxu0 0.0
    %1543 = vmatprep.subr.mxu0 0.0
    %1544 = vmatpush1.msra.mxu0 0.0
    %1545 = vmatprep.subr.mxu0 0.0
    %1546 = vmatpush1.msra.mxu0 0.0
    %1547 = vmatprep.subr.mxu0 0.0
    %1548 = vmatpush1.msra.mxu0 0.0
    %1549 = vmatprep.subr.mxu0 0.0
    %1550 = vmatpush1.msra.mxu0 0.0
    %1551 = vmatprep.mubr.f32.mxu0 0.0
    %v1552 = vand.u32 %v1146, 4294901760
    %1553 = vmatmul.mubr.f32.gmra.mrb[0].mxu0 %v1552
    %v1554 = vpop.f32.mrb[0].mxu0
    %v1555 = vadd.f32 %v1472, %v1554
    %v1556 = vpop.f32.mrb[0].mxu0
    %1557 = vdwg.mxu0
    %1558 = vmatprep.subr.mxu0 0.0
    %v1559 = vand.u32 %v1134, 4294901760
    %1560 = vmatpush1.msra.mxu0 %v1559
    %1561 = vmatprep.subr.mxu0 0.0
    %v1562 = vand.u32 %v1135, 4294901760
    %1563 = vmatpush1.msra.mxu0 %v1562
    %1564 = vmatprep.subr.mxu0 0.0
    %v1565 = vand.u32 %v1136, 4294901760
    %1566 = vmatpush1.msra.mxu0 %v1565
    %1567 = vmatprep.subr.mxu0 0.0
    %v1568 = vand.u32 %v1137, 4294901760
    %1569 = vmatpush1.msra.mxu0 %v1568
    %1570 = vmatprep.subr.mxu0 0.0
    %1571 = vmatpush1.msra.mxu0 0.0
    %1572 = vmatprep.subr.mxu0 0.0
    %1573 = vmatpush1.msra.mxu0 0.0
    %1574 = vmatprep.subr.mxu0 0.0
    %1575 = vmatpush1.msra.mxu0 0.0
    %1576 = vmatprep.subr.mxu0 0.0
    %1577 = vmatpush1.msra.mxu0 0.0
    %1578 = vmatprep.subr.mxu0 0.0
    %1579 = vmatpush1.msra.mxu0 0.0
    %1580 = vmatprep.subr.mxu0 0.0
    %1581 = vmatpush1.msra.mxu0 0.0
    %1582 = vmatprep.subr.mxu0 0.0
    %1583 = vmatpush1.msra.mxu0 0.0
    %1584 = vmatprep.subr.mxu0 0.0
    %1585 = vmatpush1.msra.mxu0 0.0
    %1586 = vmatprep.subr.mxu0 0.0
    %1587 = vmatpush1.msra.mxu0 0.0
    %1588 = vmatprep.subr.mxu0 0.0
    %1589 = vmatpush1.msra.mxu0 0.0
    %1590 = vmatprep.subr.mxu0 0.0
    %1591 = vmatpush1.msra.mxu0 0.0
    %1592 = vmatprep.subr.mxu0 0.0
    %1593 = vmatpush1.msra.mxu0 0.0
    %1594 = vmatprep.subr.mxu0 0.0
    %1595 = vmatpush1.msra.mxu0 0.0
    %1596 = vmatprep.subr.mxu0 0.0
    %1597 = vmatpush1.msra.mxu0 0.0
    %1598 = vmatprep.subr.mxu0 0.0
    %1599 = vmatpush1.msra.mxu0 0.0
    %1600 = vmatprep.subr.mxu0 0.0
    %1601 = vmatpush1.msra.mxu0 0.0
    %1602 = vmatprep.subr.mxu0 0.0
    %1603 = vmatpush1.msra.mxu0 0.0
    %1604 = vmatprep.subr.mxu0 0.0
    %1605 = vmatpush1.msra.mxu0 0.0
    %1606 = vmatprep.subr.mxu0 0.0
    %1607 = vmatpush1.msra.mxu0 0.0
    %1608 = vmatprep.subr.mxu0 0.0
    %1609 = vmatpush1.msra.mxu0 0.0
    %1610 = vmatprep.subr.mxu0 0.0
    %1611 = vmatpush1.msra.mxu0 0.0
    %1612 = vmatprep.subr.mxu0 0.0
    %1613 = vmatpush1.msra.mxu0 0.0
    %1614 = vmatprep.subr.mxu0 0.0
    %1615 = vmatpush1.msra.mxu0 0.0
    %1616 = vmatprep.subr.mxu0 0.0
    %1617 = vmatpush1.msra.mxu0 0.0
    %1618 = vmatprep.subr.mxu0 0.0
    %1619 = vmatpush1.msra.mxu0 0.0
    %1620 = vmatprep.subr.mxu0 0.0
    %1621 = vmatpush1.msra.mxu0 0.0
    %1622 = vmatprep.subr.mxu0 0.0
    %1623 = vmatpush1.msra.mxu0 0.0
    %1624 = vmatprep.subr.mxu0 0.0
    %1625 = vmatpush1.msra.mxu0 0.0
    %1626 = vmatprep.mubr.f32.mxu0 0.0
    %v1627 = vand.u32 %v1146, 4294901760
    %1628 = vmatmul.mubr.f32.gmra.mrb[0].mxu0 %v1627
    %v1629 = vpop.f32.mrb[0].mxu0
    %v1630 = vadd.f32 %v1555, %v1629
    %v1631 = vpop.f32.mrb[0].mxu0
    %1632 = vdwg.mxu0
    %v1633 = vtanh.pop %v1630
    %vm1634 = vcmask 64512
    %1635 = vst.msk [vmem:[#allocation2] sm:$0xff] %vm1634, %v1633
    // Predicated region
    $region30: #{actor_forward.1} parent=1 // pred_check
      _
    $region31: #{actor_forward.1} parent=1 // pred_check_branch
      %1637 = sbr.rel (0) target = $region33
    $region32: #{actor_forward.1} parent=1 // pred_region
      %s1639 = ssub.s32 128, 128
      %1640 = vsyncadd [#allocation3], %s1639
      %s1642 = sshll.u32 [#allocation2], 4
      %s1643 = int_to_ptr.vmem [resolvable:$true] %s1642
      %1645 = dma.vmem_to_hbm [thread:$0]  %s1643, 128, %s7, [#allocation3]
    $region33: #{actor_forward.1} parent=1 // pred_fallthru
      _
    // Predicated region
    $region34: #{actor_forward.1} parent=1 // pred_check
      _
    $region35: #{actor_forward.1} parent=1 // pred_check_branch
      %1647 = sbr.rel (0) target = $region37
    $region36: #{actor_forward.1} parent=1 // pred_region
      %1648 = dma.done [#allocation3], 128
    $region37: #{actor_forward.1} parent=1 // pred_fallthru
      _
    %1649 = vsyncpa [#allocation3], 1

</llo_original>
